<compile_context>
chip_gen: v7x
topology: tpu7x:2x2x1
jax: 0.10.0
libtpu: 0.0.40
codegen_flags: <defaults>
</compile_context>

<pallas_src>
import functools

import numpy as np
import jax
import jax.numpy as jnp
from jax.experimental import pallas as pl
from jax.experimental.pallas import tpu as pltpu

LANE = 128

_G1D = np.float32([1.0, 4.0, 6.0, 4.0, 1.0])
_G1D = _G1D / _G1D.sum()                        # separable factor [1,4,6,4,1]/16
_GK = np.outer(_G1D, _G1D).astype(np.float32)   # 5x5 kernel, sums to 1


def _round_up(x, m):
    return ((x + m - 1) // m) * m


# ---------------------------------------------------------------------------
# Pallas kernel:  out_tile = (A0 @ x_blk + A1 @ x_next_blk) @ B
#   A0/A1 : (TRO, TRI)  banded vertical 5-tap (stride-2 down / polyphase up)
#           for one output-row tile; A1 covers the halo rows living in the
#           next input row block.
#   B     : (Wpad, OWpad) banded horizontal 5-tap, stride / phase / lane
#           padding folded in.
# ---------------------------------------------------------------------------
def _sep_filter_kernel(a0_ref, a1_ref, b_ref, x0_ref, x1_ref, o_ref):
    dot = functools.partial(jnp.dot, preferred_element_type=jnp.float32,
                            precision=jax.lax.Precision.HIGHEST)
    v = dot(a0_ref[...], x0_ref[0]) + dot(a1_ref[...], x1_ref[0])  # vertical
    o_ref[0] = dot(v, b_ref[...])                                  # horizontal


def _build_matrices(down, OW, tro, tri, wpad, owpad):
    g = _G1D
    a = np.zeros((tro, 2 * tri), np.float32)
    b = np.zeros((wpad, owpad), np.float32)
    if down:
        # out[i, j] = sum_{kh,kw} g[kh] g[kw] * xpad2[2i+kh, 2j+kw]
        for i in range(tro):
            for kh in range(5):
                a[i, 2 * i + kh] = g[kh]
        for j in range(OW):
            for kw in range(5):
                b[2 * j + kw, j] = g[kw]
    else:
        # adjoint (conv_transpose): out[p, q] = sum_{a,b} x[a,b] g[p-2a+2] g[q-2b+2]
        # input padded by 1 (top/left); row within tile: aq_local = (i+4-kh)/2
        for i in range(tro):
            for kh in range(5):
                if (i + 4 - kh) % 2 == 0:
                    a[i, (i + 4 - kh) // 2] = g[kh]
        for q in range(OW):
            for kw in range(5):
                if (q + 4 - kw) % 2 == 0:
                    b[(q + 4 - kw) // 2, q] = g[kw]
    return a[:, :tri], a[:, tri:], b


def _gaussian_sample_pallas(x_chw, down, block_rows=256):
    """x_chw: (C, H, W) float32 -> (C, OH, OW) float32."""
    C, H, W = x_chw.shape
    if down:
        OH, OW = (H - 1) // 2 + 1, (W - 1) // 2 + 1
        pad_t, pad_l = 2, 2
        tro = min(_round_up(max(block_rows, 8), 8), _round_up(OH, 8))
        tri = 2 * tro                       # input rows consumed per tile stride
        wpad = _round_up(W + 4, LANE)
    else:
        OH, OW = 2 * H - 1, 2 * W - 1
        pad_t, pad_l = 1, 1
        tro = min(_round_up(max(block_rows, 16), 16), _round_up(OH, 16))
        tri = tro // 2
        wpad = _round_up(W + 2, LANE)
    owpad = _round_up(OW, LANE)
    n_t = pl.cdiv(OH, tro)
    rtot = (n_t + 1) * tri                  # extra zero block so the halo
                                            # BlockSpec (t+1) is always in range

    a0, a1, b = _build_matrices(down, OW, tro, tri, wpad, owpad)
    a0, a1, b = jnp.asarray(a0), jnp.asarray(a1), jnp.asarray(b)

    # Single pad of the input: top/left conv padding + bottom/right zeros up to
    # the tiled / lane-dense extents.
    xp = jnp.pad(x_chw.astype(jnp.float32),
                 ((0, 0), (pad_t, rtot - H - pad_t), (pad_l, wpad - W - pad_l)))

    out_full = pl.pallas_call(
        _sep_filter_kernel,
        out_shape=jax.ShapeDtypeStruct((C, n_t * tro, owpad), jnp.float32),
        grid_spec=pltpu.PrefetchScalarGridSpec(
            num_scalar_prefetch=0,
            grid=(C, n_t),
            in_specs=[
                pl.BlockSpec((tro, tri), lambda c, t: (0, 0)),             # A0
                pl.BlockSpec((tro, tri), lambda c, t: (0, 0)),             # A1
                pl.BlockSpec((wpad, owpad), lambda c, t: (0, 0)),          # B
                pl.BlockSpec((1, tri, wpad), lambda c, t: (c, t, 0)),      # x blk
                pl.BlockSpec((1, tri, wpad), lambda c, t: (c, t + 1, 0)),  # halo
            ],
            out_specs=pl.BlockSpec((1, tro, owpad), lambda c, t: (c, t, 0)),
        ),
        compiler_params=pltpu.CompilerParams(
            dimension_semantics=("parallel", "parallel")),
    )(a0, a1, b, xp, xp)

    return out_full[:, :OH, :OW]


class GaussianSampler:
    """JAX/Pallas port of the PyTorch GaussianSampler.

    forward(img): uses batch element 0, channels 0..2, filters each channel
    independently with the fixed 5x5 binomial Gaussian (stride-2 conv when
    down=True, stride-2 transposed conv otherwise) and returns (1, 3, OH, OW).
    """

    def __init__(self, down=True, block_rows=256):
        self.down = down
        self.block_rows = block_rows
        self.gaussian_kernel = jnp.asarray(_GK)[None, None]   # parity with module
        # TODO(synk): `img.requires_grad = False` has no JAX equivalent; no-op.

    def __call__(self, img):
        x = jnp.asarray(img)[0, 0:3].astype(jnp.float32)      # (3, H, W)
        out = _gaussian_sample_pallas(x, self.down, self.block_rows)
        return out[None]                                       # (1, 3, OH, OW)


# ---------------------------------------------------------------------------
# Pure-JAX reference (matches F.conv2d / F.conv_transpose2d for this kernel).
# ---------------------------------------------------------------------------
def _reference(x_chw, down):
    x = x_chw[:, None].astype(jnp.float32)          # (3,1,H,W)
    w = jnp.asarray(_GK)[None, None]                # (1,1,5,5)
    if down:
        out = jax.lax.conv_general_dilated(
            x, w, window_strides=(2, 2), padding=((2, 2), (2, 2)),
            precision=jax.lax.Precision.HIGHEST)
    else:
        out = jax.lax.conv_general_dilated(
            x, w, window_strides=(1, 1), padding=((2, 2), (2, 2)),
            lhs_dilation=(2, 2), precision=jax.lax.Precision.HIGHEST)
    return out[:, 0]


if __name__ == "__main__":
    key = jax.random.PRNGKey(0)
    k1, k2 = jax.random.split(key)
    img = jax.random.normal(k1, (2, 3, 16, 16), jnp.float32)

    # Down-sampling path (module default).
    down = GaussianSampler(down=True)
    out_down = jax.block_until_ready(down(img))
    assert out_down.shape == (1, 3, 8, 8), out_down.shape
    assert out_down.dtype == jnp.float32
    ref_down = _reference(img[0, :3], True)
    err = float(jnp.max(jnp.abs(out_down[0] - ref_down)))
    assert bool(jnp.allclose(out_down[0], ref_down, atol=1e-4, rtol=1e-4)), err

    # Up-sampling (transposed-conv) path.
    up = GaussianSampler(down=False)
    out_up = jax.block_until_ready(up(img))
    assert out_up.shape == (1, 3, 31, 31), out_up.shape
    ref_up = _reference(img[0, :3], False)
    err = float(jnp.max(jnp.abs(out_up[0] - ref_up)))
    assert bool(jnp.allclose(out_up[0], ref_up, atol=1e-4, rtol=1e-4)), err

    # Multi-row-tile / halo / last-block-padding check (review request):
    # odd spatial size, small block_rows so the grid has several row tiles.
    img2 = jax.random.normal(k2, (1, 3, 75, 75), jnp.float32)
    for is_down in (True, False):
        samp = GaussianSampler(down=is_down, block_rows=16)
        got = jax.block_until_ready(samp(img2))
        want = _reference(img2[0, :3], is_down)
        assert got.shape == (1,) + want.shape, (got.shape, want.shape)
        err = float(jnp.max(jnp.abs(got[0] - want)))
        assert bool(jnp.allclose(got[0], want, atol=1e-4, rtol=1e-4)), (is_down, err)

    print("KERNEL_OK")
</pallas_src>

<mosaic_0001>
module attributes {stable_mosaic.version = 11 : i64} {
  func.func @_sep_filter_kernel(%arg0: i32, %arg1: i32, %arg2: memref<8x16xf32, #tpu.memory_space<vmem>>, %arg3: memref<8x16xf32, #tpu.memory_space<vmem>>, %arg4: memref<128x128xf32, #tpu.memory_space<vmem>>, %arg5: memref<1x16x128xf32, #tpu.memory_space<vmem>>, %arg6: memref<1x16x128xf32, #tpu.memory_space<vmem>>, %arg7: memref<1x8x128xf32, #tpu.memory_space<vmem>>) attributes {dimension_semantics = [#tpu.dimension_semantics<parallel>, #tpu.dimension_semantics<parallel>], iteration_bounds = array<i64: 3, 1>, scalar_prefetch = 0 : i64, scratch_operands = 0 : i64, tpu.core_type = #tpu.core_type<tc>, window_params = [{pipeline_mode = #tpu.pipeline_mode<synchronous>, transform_indices = @transform_0, window_bounds = array<i64: 8, 16>}, {pipeline_mode = #tpu.pipeline_mode<synchronous>, transform_indices = @transform_1, window_bounds = array<i64: 8, 16>}, {pipeline_mode = #tpu.pipeline_mode<synchronous>, transform_indices = @transform_2, window_bounds = array<i64: 128, 128>}, {transform_indices = @transform_3, window_bounds = array<i64: 1, 16, 128>}, {transform_indices = @transform_4, window_bounds = array<i64: 1, 16, 128>}, {transform_indices = @transform_5, window_bounds = array<i64: 1, 8, 128>}]} {
    %c0 = arith.constant 0 : index
    %c0_0 = arith.constant 0 : index
    %0 = vector.load %arg2[%c0, %c0_0] : memref<8x16xf32, #tpu.memory_space<vmem>>, vector<8x16xf32>
    %c0_1 = arith.constant 0 : index
    %c0_2 = arith.constant 0 : index
    %c0_3 = arith.constant 0 : index
    %1 = vector.load %arg5[%c0_1, %c0_2, %c0_3] : memref<1x16x128xf32, #tpu.memory_space<vmem>>, vector<1x16x128xf32>
    %2 = vector.shape_cast %1 : vector<1x16x128xf32> to vector<16x128xf32>
    %cst = arith.constant dense<0.000000e+00> : vector<8x128xf32>
    %3 = tpu.matmul %0, %2, %cst {dimension_numbers = #tpu.dot_dimension_numbers<[1], [0], [0], [1], [0, 0, 1, 1], [], []>, precision = #tpu.contract_precision<fp32>} : vector<8x16xf32>, vector<16x128xf32>, vector<8x128xf32> -> vector<8x128xf32>
    %c0_4 = arith.constant 0 : index
    %c0_5 = arith.constant 0 : index
    %4 = vector.load %arg3[%c0_4, %c0_5] : memref<8x16xf32, #tpu.memory_space<vmem>>, vector<8x16xf32>
    %c0_6 = arith.constant 0 : index
    %c0_7 = arith.constant 0 : index
    %c0_8 = arith.constant 0 : index
    %5 = vector.load %arg6[%c0_6, %c0_7, %c0_8] : memref<1x16x128xf32, #tpu.memory_space<vmem>>, vector<1x16x128xf32>
    %6 = vector.shape_cast %5 : vector<1x16x128xf32> to vector<16x128xf32>
    %cst_9 = arith.constant dense<0.000000e+00> : vector<8x128xf32>
    %7 = tpu.matmul %4, %6, %cst_9 {dimension_numbers = #tpu.dot_dimension_numbers<[1], [0], [0], [1], [0, 0, 1, 1], [], []>, precision = #tpu.contract_precision<fp32>} : vector<8x16xf32>, vector<16x128xf32>, vector<8x128xf32> -> vector<8x128xf32>
    %8 = arith.addf %3, %7 : vector<8x128xf32>
    %c0_10 = arith.constant 0 : index
    %c0_11 = arith.constant 0 : index
    %9 = vector.load %arg4[%c0_10, %c0_11] : memref<128x128xf32, #tpu.memory_space<vmem>>, vector<128x128xf32>
    %cst_12 = arith.constant dense<0.000000e+00> : vector<8x128xf32>
    %10 = tpu.matmul %8, %9, %cst_12 {dimension_numbers = #tpu.dot_dimension_numbers<[1], [0], [0], [1], [0, 0, 1, 1], [], []>, precision = #tpu.contract_precision<fp32>} : vector<8x128xf32>, vector<128x128xf32>, vector<8x128xf32> -> vector<8x128xf32>
    %c0_13 = arith.constant 0 : index
    %c0_14 = arith.constant 0 : index
    %c0_15 = arith.constant 0 : index
    %11 = vector.load %arg7[%c0_13, %c0_14, %c0_15] : memref<1x8x128xf32, #tpu.memory_space<vmem>>, vector<1x8x128xf32>
    %12 = vector.shape_cast %11 : vector<1x8x128xf32> to vector<8x128xf32>
    %13 = vector.shape_cast %10 : vector<8x128xf32> to vector<1x8x128xf32>
    tpu.vector_store %arg7[%c0_13, %c0_14, %c0_15], %13 {strides = array<i32>} : memref<1x8x128xf32, #tpu.memory_space<vmem>>, vector<1x8x128xf32>,
    return
  }
  func.func @transform_0(%arg0: i32, %arg1: i32) -> (i32, i32) {
    %c0_i32 = arith.constant 0 : i32
    %c0_i32_0 = arith.constant 0 : i32
    %c0_i32_1 = arith.constant 0 : i32
    return %c0_i32, %c0_i32_0 : i32, i32
  }
  func.func @transform_1(%arg0: i32, %arg1: i32) -> (i32, i32) {
    %c0_i32 = arith.constant 0 : i32
    %c0_i32_0 = arith.constant 0 : i32
    %c0_i32_1 = arith.constant 0 : i32
    return %c0_i32, %c0_i32_0 : i32, i32
  }
  func.func @transform_2(%arg0: i32, %arg1: i32) -> (i32, i32) {
    %c0_i32 = arith.constant 0 : i32
    %c0_i32_0 = arith.constant 0 : i32
    %c0_i32_1 = arith.constant 0 : i32
    return %c0_i32, %c0_i32_0 : i32, i32
  }
  func.func @transform_3(%arg0: i32, %arg1: i32) -> (i32, i32, i32) {
    %c0_i32 = arith.constant 0 : i32
    %c0_i32_0 = arith.constant 0 : i32
    return %arg0, %arg1, %c0_i32 : i32, i32, i32
  }
  func.func @transform_4(%arg0: i32, %arg1: i32) -> (i32, i32, i32) {
    %c1_i32 = arith.constant 1 : i32
    %0 = arith.addi %arg1, %c1_i32 : i32
    %c0_i32 = arith.constant 0 : i32
    %c0_i32_0 = arith.constant 0 : i32
    return %arg0, %0, %c0_i32 : i32, i32, i32
  }
  func.func @transform_5(%arg0: i32, %arg1: i32) -> (i32, i32, i32) {
    %c0_i32 = arith.constant 0 : i32
    %c0_i32_0 = arith.constant 0 : i32
    return %arg0, %arg1, %c0_i32 : i32, i32, i32
  }
}

</mosaic_0001>

<llo_original>
// kernel: tpu_custom_call.1
$region0: #{tpu_custom_call.1}
  #allocation0 [shape = 'u32[]', space=smem, size = 0x4, offset = 0x4, fixed_abs, tag = 'smem constant byte address 0x4 - core index']
  #allocation1 [shape = 'u32[144,128]{1,0:T(1,128)}', space=vmem, size = 0x12000, scoped, tag = 'internal scratch']
  %s0 = inlined_call_operand.hbm [shape: f32[8,16], index: 0, kind: input, shape index: {}]
  %s1 = inlined_call_operand.hbm [shape: f32[8,16], index: 1, kind: input, shape index: {}]
  %s2 = inlined_call_operand.hbm [shape: f32[128,128], index: 2, kind: input, shape index: {}]
  %s3 = inlined_call_operand.hbm [shape: f32[3,32,128], index: 3, kind: input, shape index: {}]
  %s4 = inlined_call_operand.hbm [shape: f32[3,32,128], index: 4, kind: input, shape index: {}]
  %s5 = inlined_call_operand.hbm [shape: f32[3,8,128], index: 5, kind: output, shape index: {}]
  %s6 = sld [smem:[#allocation0]]
  $region73: #{tpu_custom_call.1} parent=0
    _
  %s8 = ssub.s32 1, %s6
  %s9 = scalar_select 0, %s8, %s6
  $region1: #{tpu_custom_call.1} parent=0
    #allocation2 [shape = 'u8[4096]{0}', space=vmem, size = 0x1000, scoped, tag = 'input window, operand 0, single buffered']
    #allocation3 [shape = 's32[2]{0}', space=sflag, size = 0x8, scoped, tag = 'scoped memory for tpu_custom_call.1']
    #allocation4 [shape = 's32[2]{0}', space=sflag, size = 0x8, scoped, tag = 'scoped memory for tpu_custom_call.1']
    #allocation5 [shape = 'u8[4096]{0}', space=vmem, size = 0x1000, scoped, tag = 'input window, operand 1, single buffered']
    #allocation6 [shape = 's32[1]{0}', space=sflag, size = 0x4, scoped, tag = 'scoped memory for tpu_custom_call.1']
    #allocation7 [shape = 'u8[65536]{0}', space=vmem, size = 0x10000, scoped, tag = 'input window, operand 2, single buffered']
    #allocation8 [shape = 'u8[16384]{0}', space=vmem, size = 0x4000, scoped, tag = 'input window, operand 3']
    #allocation9 [shape = 's32[2]{0}', space=sflag, size = 0x8, scoped, tag = 'scoped memory for tpu_custom_call.1']
    #allocation10 [shape = 'u8[16384]{0}', space=vmem, size = 0x4000, scoped, tag = 'input window, operand 4']
    #allocation11 [shape = 'u8[8192]{0}', space=vmem, size = 0x2000, scoped, tag = 'output window, operand 0']
    %10 = vsyncpa [#allocation3], 0
    %11 = vsyncpa [#allocation6], 0
    %12 = vsyncpa [#allocation9], 0
    %s13 = scalar_lea.sflag [#allocation9], 1
    %14 = vsyncpa %s13, 0
    %15 = vsyncpa [#allocation4], 0
    %s16 = scalar_lea.sflag [#allocation4], 1
    %17 = vsyncpa %s16, 0
    loop: start=0, step=1, limit=5
    $region2: #{tpu_custom_call.1} parent=1 // loop_pre_header
      _
    $region3: #{tpu_custom_call.1} parent=1 // loop_header
      %s19 = sphi 0, %s23
      %p20 = scmp.ge.s32.totalorder %s19, 5
      %s26 = sphi 0, %s38
      %s27 = sphi 0, %s34
      %s28 = sphi 0, %s26
      %s29 = sphi 0, %s27
      %s30 = sphi 0, %s28
      %s31 = sphi 0, %s29
      %s39 = sphi 0, %s39
      %s41 = sphi 0, %s39
      %s42 = sphi 0, %s41
      %s56 = sphi 0, %s42
      %s60 = sphi 0, %s60
      %s62 = sphi 0, %s60
      %s63 = sphi 0, %s62
      %s77 = sphi 0, %s63
      %s81 = sphi 0, %s81
      %s83 = sphi 0, %s81
      %s84 = sphi 0, %s83
      %s98 = sphi 0, %s84
      %s106 = sphi 0, %s108
      %s109 = sphi 0, %s106
      %s110 = sphi 0, %s109
      %s126 = sphi 0, %s110
      %s136 = sphi 0, %s138
      %s139 = sphi 0, %s136
      %s140 = sphi 0, %s139
      %s156 = sphi 0, %s140
      %s164 = sphi 0, %s166
      %s167 = sphi 0, %s164
      %s168 = sphi 0, %s167
      %s184 = sphi 0, %s168
    $region4: #{tpu_custom_call.1} parent=1 // loop_header_branch
      %22 = sbr.rel (%p20) target = $region8
    $region5: #{tpu_custom_call.1} parent=1 // loop_body
      %s24 = ssub.s32 %s19, 1
      %s25 = ssub.s32 %s19, 2
      %s32 = sadd.s32 1, %s27
      %p33 = scmp.ge.s32.totalorder %s32, 1
      %s34 = scalar_select %p33, 0, %s32
      %s35 = sadd.s32 1, %s26
      %s36 = scalar_select %p33, %s35, %s26
      %p37 = scmp.ge.s32.totalorder %s36, 3
      %s38 = scalar_select %p37, 0, %s36
      %s40 = sadd.s32 %s39, 1
      %p43 = scmp.eq.s32.totalorder %s19, 2
      %p44 = scmp.ne.s32.totalorder %s39, %s41
      %p45 = scmp.eq.s32.totalorder %s19, 0
      %p46 = por %p44, %p45
      %p47 = scmp.ne.s32.totalorder %s39, %s41
      %p48 = scmp.eq.s32.totalorder %s24, 2
      %p49 = por %p47, %p48
      %p50 = scmp.ne.s32.totalorder %s41, %s42
      %p51 = scmp.eq.s32.totalorder %s24, 0
      %p52 = por %p50, %p51
      %p53 = scmp.ne.s32.totalorder %s41, %s42
      %p54 = scmp.eq.s32.totalorder %s25, 2
      %p55 = por %p53, %p54
      %p57 = scmp.ne.s32.totalorder %s42, %s56
      %p58 = scmp.eq.s32.totalorder %s25, 0
      %p59 = por %p57, %p58
      %s61 = sadd.s32 %s60, 1
      %p64 = scmp.eq.s32.totalorder %s19, 2
      %p65 = scmp.ne.s32.totalorder %s60, %s62
      %p66 = scmp.eq.s32.totalorder %s19, 0
      %p67 = por %p65, %p66
      %p68 = scmp.ne.s32.totalorder %s60, %s62
      %p69 = scmp.eq.s32.totalorder %s24, 2
      %p70 = por %p68, %p69
      %p71 = scmp.ne.s32.totalorder %s62, %s63
      %p72 = scmp.eq.s32.totalorder %s24, 0
      %p73 = por %p71, %p72
      %p74 = scmp.ne.s32.totalorder %s62, %s63
      %p75 = scmp.eq.s32.totalorder %s25, 2
      %p76 = por %p74, %p75
      %p78 = scmp.ne.s32.totalorder %s63, %s77
      %p79 = scmp.eq.s32.totalorder %s25, 0
      %p80 = por %p78, %p79
      %s82 = sadd.s32 %s81, 1
      %p85 = scmp.eq.s32.totalorder %s19, 2
      %p86 = scmp.ne.s32.totalorder %s81, %s83
      %p87 = scmp.eq.s32.totalorder %s19, 0
      %p88 = por %p86, %p87
      %p89 = scmp.ne.s32.totalorder %s81, %s83
      %p90 = scmp.eq.s32.totalorder %s24, 2
      %p91 = por %p89, %p90
      %p92 = scmp.ne.s32.totalorder %s83, %s84
      %p93 = scmp.eq.s32.totalorder %s24, 0
      %p94 = por %p92, %p93
      %p95 = scmp.ne.s32.totalorder %s83, %s84
      %p96 = scmp.eq.s32.totalorder %s25, 2
      %p97 = por %p95, %p96
      %p99 = scmp.ne.s32.totalorder %s84, %s98
      %p100 = scmp.eq.s32.totalorder %s25, 0
      %p101 = por %p99, %p100
      %s102 = ssub.s32 %s26, %s38
      %s103 = ssub.s32 %s27, %s34
      %s104 = sor.u32 %s102, %s103
      %p105 = scmp.eq.s32.totalorder %s104, 0
      %s107 = sadd.s32 %s106, 1
      %s108 = scalar_select %p105, %s106, %s107
      %p111 = pneg %p105
      %p112 = scmp.eq.s32.totalorder %s19, 2
      %p113 = por %p111, %p112
      %p114 = scmp.ne.s32.totalorder %s106, %s109
      %p115 = scmp.eq.s32.totalorder %s19, 0
      %p116 = por %p114, %p115
      %p117 = scmp.ne.s32.totalorder %s106, %s109
      %p118 = scmp.eq.s32.totalorder %s24, 2
      %p119 = por %p117, %p118
      %p120 = scmp.ne.s32.totalorder %s109, %s110
      %p121 = scmp.eq.s32.totalorder %s24, 0
      %p122 = por %p120, %p121
      %p123 = scmp.ne.s32.totalorder %s109, %s110
      %p124 = scmp.eq.s32.totalorder %s25, 2
      %p125 = por %p123, %p124
      %p127 = scmp.ne.s32.totalorder %s110, %s126
      %p128 = scmp.eq.s32.totalorder %s25, 0
      %p129 = por %p127, %p128
      %s130 = sadd.s32 %s27, 1
      %s131 = sadd.s32 %s34, 1
      %s132 = ssub.s32 %s26, %s38
      %s133 = ssub.s32 %s130, %s131
      %s134 = sor.u32 %s132, %s133
      %p135 = scmp.eq.s32.totalorder %s134, 0
      %s137 = sadd.s32 %s136, 1
      %s138 = scalar_select %p135, %s136, %s137
      %p141 = pneg %p135
      %p142 = scmp.eq.s32.totalorder %s19, 2
      %p143 = por %p141, %p142
      %p144 = scmp.ne.s32.totalorder %s136, %s139
      %p145 = scmp.eq.s32.totalorder %s19, 0
      %p146 = por %p144, %p145
      %p147 = scmp.ne.s32.totalorder %s136, %s139
      %p148 = scmp.eq.s32.totalorder %s24, 2
      %p149 = por %p147, %p148
      %p150 = scmp.ne.s32.totalorder %s139, %s140
      %p151 = scmp.eq.s32.totalorder %s24, 0
      %p152 = por %p150, %p151
      %p153 = scmp.ne.s32.totalorder %s139, %s140
      %p154 = scmp.eq.s32.totalorder %s25, 2
      %p155 = por %p153, %p154
      %p157 = scmp.ne.s32.totalorder %s140, %s156
      %p158 = scmp.eq.s32.totalorder %s25, 0
      %p159 = por %p157, %p158
      %s160 = ssub.s32 %s26, %s38
      %s161 = ssub.s32 %s27, %s34
      %s162 = sor.u32 %s160, %s161
      %p163 = scmp.eq.s32.totalorder %s162, 0
      %s165 = sadd.s32 %s164, 1
      %s166 = scalar_select %p163, %s164, %s165
      %p169 = pneg %p163
      %p170 = scmp.eq.s32.totalorder %s19, 2
      %p171 = por %p169, %p170
      %p172 = scmp.ne.s32.totalorder %s164, %s167
      %p173 = scmp.eq.s32.totalorder %s19, 0
      %p174 = por %p172, %p173
      %p175 = scmp.ne.s32.totalorder %s164, %s167
      %p176 = scmp.eq.s32.totalorder %s24, 2
      %p177 = por %p175, %p176
      %p178 = scmp.ne.s32.totalorder %s167, %s168
      %p179 = scmp.eq.s32.totalorder %s24, 0
      %p180 = por %p178, %p179
      %p181 = scmp.ne.s32.totalorder %s167, %s168
      %p182 = scmp.eq.s32.totalorder %s25, 2
      %p183 = por %p181, %p182
      %p185 = scmp.ne.s32.totalorder %s168, %s184
      %p186 = scmp.eq.s32.totalorder %s25, 0
      %p187 = por %p185, %p186
      %p188 = scmp.le.s32.totalorder 1, %s19
      %p189 = scmp.lt.s32.totalorder %s19, 4
      %p190 = pnand %p188, %p189
      %p191 = pneg %p190
      // Predicated region
      $region9: #{tpu_custom_call.1} parent=5 // pred_check
        _
      $region10: #{tpu_custom_call.1} parent=5 // pred_check_branch
        %193 = sbr.rel (%p190) target = $region12
      $region11: #{tpu_custom_call.1} parent=5 // pred_region
        %s194 = ssub.s32 %s19, 1
        // Predicated region
        $region13: #{tpu_custom_call.1} parent=11 // pred_check
          %p195 = pneg %p52
        $region14: #{tpu_custom_call.1} parent=11 // pred_check_branch
          %197 = sbr.rel (%p195) target = $region16
        $region15: #{tpu_custom_call.1} parent=11 // pred_region
          %s199 = ssub.s32 128, 128
          %200 = vsyncadd [#allocation3], %s199
          %s202 = sshll.u32 [#allocation2], 4
          %s203 = int_to_ptr.vmem [resolvable:$true] %s202
          %205 = dma.hbm_to_vmem [thread:$0]  %s0, 128, %s203, [#allocation3]
        $region16: #{tpu_custom_call.1} parent=11 // pred_fallthru
          _
        // Predicated region
        $region17: #{tpu_custom_call.1} parent=11 // pred_check
          %p206 = pneg %p73
        $region18: #{tpu_custom_call.1} parent=11 // pred_check_branch
          %208 = sbr.rel (%p206) target = $region20
        $region19: #{tpu_custom_call.1} parent=11 // pred_region
          %s210 = ssub.s32 128, 128
          %211 = vsyncadd [#allocation6], %s210
          %s213 = sshll.u32 [#allocation5], 4
          %s214 = int_to_ptr.vmem [resolvable:$true] %s213
          %216 = dma.hbm_to_vmem [thread:$0]  %s1, 128, %s214, [#allocation6]
        $region20: #{tpu_custom_call.1} parent=11 // pred_fallthru
          _
        // Predicated region
        $region21: #{tpu_custom_call.1} parent=11 // pred_check
          %p217 = pneg %p94
        $region22: #{tpu_custom_call.1} parent=11 // pred_check_branch
          %219 = sbr.rel (%p217) target = $region24
        $region23: #{tpu_custom_call.1} parent=11 // pred_region
          %s221 = ssub.s32 2048, 2048
          %222 = vsyncadd [#allocation6], %s221
          %s223 = sshll.u32 [#allocation7], 4
          %s224 = int_to_ptr.vmem [resolvable:$true] %s223
          %229 = dma.hbm_to_vmem [thread:$0]  %s2, 2048, %s224, [#allocation6], 128, 128, 8
        $region24: #{tpu_custom_call.1} parent=11 // pred_fallthru
          _
      $region12: #{tpu_custom_call.1} parent=5 // pred_fallthru
        _
      %p230 = scmp.lt.s32.totalorder %s19, 3
      // Predicated region
      $region25: #{tpu_custom_call.1} parent=5 // pred_check
        %p231 = pneg %p230
      $region26: #{tpu_custom_call.1} parent=5 // pred_check_branch
        %233 = sbr.rel (%p231) target = $region28
      $region27: #{tpu_custom_call.1} parent=5 // pred_region
        // Predicated region
        $region29: #{tpu_custom_call.1} parent=27 // pred_check
          %p234 = pneg %p116
        $region30: #{tpu_custom_call.1} parent=27 // pred_check_branch
          %236 = sbr.rel (%p234) target = $region32
        $region31: #{tpu_custom_call.1} parent=27 // pred_region
          %s237 = sand.u32 %s19, 1
          %s238 = scalar_lea.sflag [#allocation9], %s237
          %s239 = sand.u32 %s106, 1
          %s240 = smul.addr %s239, 16
          %s241 = scalar_lea.vmem [#allocation8], %s240
          %s242 = smul.u32 2, %s27
          %s244 = ssub.s32 256, 256
          %245 = vsyncadd %s238, %s244
          %s246 = smul.addr %s26, 4
          %s247 = sadd.s32 %s242, %s246
          %s248 = smul.addr %s247, 128
          %s249 = scalar_lea.hbm %s3, %s248
          %s250 = sshll.u32 %s241, 4
          %s251 = int_to_ptr.vmem [resolvable:$true] %s250
          %256 = dma.hbm_to_vmem [thread:$0]  %s249, 256, %s251, %s238, 128, 128, 8
        $region32: #{tpu_custom_call.1} parent=27 // pred_fallthru
          _
        // Predicated region
        $region33: #{tpu_custom_call.1} parent=27 // pred_check
          %p257 = pneg %p146
        $region34: #{tpu_custom_call.1} parent=27 // pred_check_branch
          %259 = sbr.rel (%p257) target = $region36
        $region35: #{tpu_custom_call.1} parent=27 // pred_region
          %s260 = sand.u32 %s19, 1
          %s261 = scalar_lea.sflag [#allocation9], %s260
          %s262 = sand.u32 %s136, 1
          %s263 = smul.addr %s262, 16
          %s264 = scalar_lea.vmem [#allocation10], %s263
          %s265 = sadd.s32 %s27, 1
          %s266 = smul.u32 2, %s265
          %s268 = ssub.s32 256, 256
          %269 = vsyncadd %s261, %s268
          %s270 = smul.addr %s26, 4
          %s271 = sadd.s32 %s266, %s270
          %s272 = smul.addr %s271, 128
          %s273 = scalar_lea.hbm %s4, %s272
          %s274 = sshll.u32 %s264, 4
          %s275 = int_to_ptr.vmem [resolvable:$true] %s274
          %280 = dma.hbm_to_vmem [thread:$0]  %s273, 256, %s275, %s261, 128, 128, 8
        $region36: #{tpu_custom_call.1} parent=27 // pred_fallthru
          _
      $region28: #{tpu_custom_call.1} parent=5 // pred_fallthru
        _
      %p281 = scmp.le.s32.totalorder 1, %s19
      %p282 = scmp.lt.s32.totalorder %s19, 4
      %p283 = pnand %p281, %p282
      %p284 = pneg %p283
      // Predicated region
      $region37: #{tpu_custom_call.1} parent=5 // pred_check
        _
      $region38: #{tpu_custom_call.1} parent=5 // pred_check_branch
        %286 = sbr.rel (%p283) target = $region40
      $region39: #{tpu_custom_call.1} parent=5 // pred_region
        %s287 = ssub.s32 %s19, 1
        // Predicated region
        $region41: #{tpu_custom_call.1} parent=39 // pred_check
          %p288 = pneg %p52
        $region42: #{tpu_custom_call.1} parent=39 // pred_check_branch
          %290 = sbr.rel (%p288) target = $region44
        $region43: #{tpu_custom_call.1} parent=39 // pred_region
          %291 = dma.done [#allocation3], 128
        $region44: #{tpu_custom_call.1} parent=39 // pred_fallthru
          _
        // Predicated region
        $region45: #{tpu_custom_call.1} parent=39 // pred_check
          %p292 = pneg %p73
        $region46: #{tpu_custom_call.1} parent=39 // pred_check_branch
          %294 = sbr.rel (%p292) target = $region48
        $region47: #{tpu_custom_call.1} parent=39 // pred_region
          %295 = dma.done [#allocation6], 128
        $region48: #{tpu_custom_call.1} parent=39 // pred_fallthru
          _
        // Predicated region
        $region49: #{tpu_custom_call.1} parent=39 // pred_check
          %p296 = pneg %p94
        $region50: #{tpu_custom_call.1} parent=39 // pred_check_branch
          %298 = sbr.rel (%p296) target = $region52
        $region51: #{tpu_custom_call.1} parent=39 // pred_region
          %299 = dma.done [#allocation6], 2048
        $region52: #{tpu_custom_call.1} parent=39 // pred_fallthru
          _
        %s300 = sand.u32 %s24, 1
        %s301 = scalar_lea.sflag [#allocation9], %s300
        %s302 = sand.u32 %s109, 1
        %s303 = smul.addr %s302, 16
        %s304 = scalar_lea.vmem [#allocation8], %s303
        // Predicated region
        $region53: #{tpu_custom_call.1} parent=39 // pred_check
          %p305 = pneg %p122
        $region54: #{tpu_custom_call.1} parent=39 // pred_check_branch
          %307 = sbr.rel (%p305) target = $region56
        $region55: #{tpu_custom_call.1} parent=39 // pred_region
          %308 = dma.done %s301, 256
        $region56: #{tpu_custom_call.1} parent=39 // pred_fallthru
          _
        %s309 = sand.u32 %s24, 1
        %s310 = scalar_lea.sflag [#allocation9], %s309
        %s311 = sand.u32 %s139, 1
        %s312 = smul.addr %s311, 16
        %s313 = scalar_lea.vmem [#allocation10], %s312
        // Predicated region
        $region57: #{tpu_custom_call.1} parent=39 // pred_check
          %p314 = pneg %p152
        $region58: #{tpu_custom_call.1} parent=39 // pred_check_branch
          %316 = sbr.rel (%p314) target = $region60
        $region59: #{tpu_custom_call.1} parent=39 // pred_region
          %317 = dma.done %s310, 256
        $region60: #{tpu_custom_call.1} parent=39 // pred_fallthru
          _
        %p318 = pneg %p52
        %p319 = pneg %p49
        %p320 = pneg %p73
        %p321 = pneg %p70
        %p322 = pneg %p94
        %p323 = pneg %p91
        %s324 = sand.u32 %s24, 1
        %s325 = scalar_lea.sflag [#allocation9], %s324
        %s326 = sand.u32 %s109, 1
        %s327 = smul.addr %s326, 16
        %s328 = scalar_lea.vmem [#allocation8], %s327
        %p329 = pneg %p122
        %p330 = pneg %p119
        %s331 = sand.u32 %s24, 1
        %s332 = scalar_lea.sflag [#allocation9], %s331
        %s333 = sand.u32 %s139, 1
        %s334 = smul.addr %s333, 16
        %s335 = scalar_lea.vmem [#allocation10], %s334
        %p336 = pneg %p152
        %p337 = pneg %p149
        %p338 = pneg %p180
        %p339 = pneg %p177
        %s340 = sand.u32 %s167, 1
        %s341 = scalar_lea.sflag [#allocation4], %s340
        %s342 = sand.u32 %s167, 1
        %s343 = smul.addr %s342, 8
        %s344 = scalar_lea.vmem [#allocation11], %s343
        %s345 = smul.u32 2, %s29
        %s346 = sadd.s32 %s29, 1
        %s347 = smul.u32 2, %s346
        %v348 = vld [vmem:[#allocation2] sm:$0xff]
        %v349 = vld [vmem:[%s304] sm:$0xff]
        %v350 = vld [vmem:[%s304 + $0x8] sm:$0xff]
        %v351 = vld [vmem:[#allocation5] sm:$0xff]
        %v352 = vld [vmem:[%s313] sm:$0xff]
        %v353 = vld [vmem:[%s313 + $0x8] sm:$0xff]
        %vm354 = vcmask 130048
        %v356 = vsel %vm354, %v351, 0
        %358 = vmatprep.subr.mxu0 0.0
        %v359 = vand.u32 %v352, 4294901760
        %360 = vmatpush1.msra.mxu0 %v359
        %361 = vmatprep.subr.mxu0 0.0
        %v362 = vand.u32 %v353, 4294901760
        %363 = vmatpush1.msra.mxu0 %v362
        %364 = vmatprep.subr.mxu0 0.0
        %365 = vmatpush1.msra.mxu0 0.0
        %366 = vmatprep.subr.mxu0 0.0
        %367 = vmatpush1.msra.mxu0 0.0
        %368 = vmatprep.subr.mxu0 0.0
        %369 = vmatpush1.msra.mxu0 0.0
        %370 = vmatprep.subr.mxu0 0.0
        %371 = vmatpush1.msra.mxu0 0.0
        %372 = vmatprep.subr.mxu0 0.0
        %373 = vmatpush1.msra.mxu0 0.0
        %374 = vmatprep.subr.mxu0 0.0
        %375 = vmatpush1.msra.mxu0 0.0
        %376 = vmatprep.subr.mxu0 0.0
        %377 = vmatpush1.msra.mxu0 0.0
        %378 = vmatprep.subr.mxu0 0.0
        %379 = vmatpush1.msra.mxu0 0.0
        %380 = vmatprep.subr.mxu0 0.0
        %381 = vmatpush1.msra.mxu0 0.0
        %382 = vmatprep.subr.mxu0 0.0
        %383 = vmatpush1.msra.mxu0 0.0
        %384 = vmatprep.subr.mxu0 0.0
        %385 = vmatpush1.msra.mxu0 0.0
        %386 = vmatprep.subr.mxu0 0.0
        %387 = vmatpush1.msra.mxu0 0.0
        %388 = vmatprep.subr.mxu0 0.0
        %389 = vmatpush1.msra.mxu0 0.0
        %390 = vmatprep.subr.mxu0 0.0
        %391 = vmatpush1.msra.mxu0 0.0
        %392 = vmatprep.subr.mxu0 0.0
        %393 = vmatpush1.msra.mxu0 0.0
        %394 = vmatprep.subr.mxu0 0.0
        %395 = vmatpush1.msra.mxu0 0.0
        %396 = vmatprep.subr.mxu0 0.0
        %397 = vmatpush1.msra.mxu0 0.0
        %398 = vmatprep.subr.mxu0 0.0
        %399 = vmatpush1.msra.mxu0 0.0
        %400 = vmatprep.subr.mxu0 0.0
        %401 = vmatpush1.msra.mxu0 0.0
        %402 = vmatprep.subr.mxu0 0.0
        %403 = vmatpush1.msra.mxu0 0.0
        %404 = vmatprep.subr.mxu0 0.0
        %405 = vmatpush1.msra.mxu0 0.0
        %406 = vmatprep.subr.mxu0 0.0
        %407 = vmatpush1.msra.mxu0 0.0
        %408 = vmatprep.subr.mxu0 0.0
        %409 = vmatpush1.msra.mxu0 0.0
        %410 = vmatprep.subr.mxu0 0.0
        %411 = vmatpush1.msra.mxu0 0.0
        %412 = vmatprep.subr.mxu0 0.0
        %413 = vmatpush1.msra.mxu0 0.0
        %414 = vmatprep.subr.mxu0 0.0
        %415 = vmatpush1.msra.mxu0 0.0
        %416 = vmatprep.subr.mxu0 0.0
        %417 = vmatpush1.msra.mxu0 0.0
        %418 = vmatprep.subr.mxu0 0.0
        %419 = vmatpush1.msra.mxu0 0.0
        %420 = vmatprep.subr.mxu0 0.0
        %421 = vmatpush1.msra.mxu0 0.0
        %422 = vmatprep.subr.mxu0 0.0
        %423 = vmatpush1.msra.mxu0 0.0
        %424 = vmatprep.mubr.f32.mxu0 0.0
        %v425 = vand.u32 %v356, 4294901760
        %v426 = vsub.f32 %v356, %v425
        %v427 = vand.u32 %v426, 4294901760
        %v428 = vsub.f32 %v426, %v427
        %v429 = vand.u32 %v428, 4294901760
        %430 = vmatmul.mubr.f32.gmra.mrb[0].mxu0 %v429
        %v431 = vpop.f32.mrb[0].mxu0
        %v432 = vadd.f32 0.0, %v431
        %v433 = vpop.f32.mrb[0].mxu0
        %434 = vdwg.mxu0
        %435 = vmatprep.subr.mxu0 0.0
        %v436 = vand.u32 %v352, 4294901760
        %v437 = vsub.f32 %v352, %v436
        %v438 = vand.u32 %v437, 4294901760
        %v439 = vsub.f32 %v437, %v438
        %v440 = vand.u32 %v439, 4294901760
        %441 = vmatpush1.msra.mxu0 %v440
        %442 = vmatprep.subr.mxu0 0.0
        %v443 = vand.u32 %v353, 4294901760
        %v444 = vsub.f32 %v353, %v443
        %v445 = vand.u32 %v444, 4294901760
        %v446 = vsub.f32 %v444, %v445
        %v447 = vand.u32 %v446, 4294901760
        %448 = vmatpush1.msra.mxu0 %v447
        %449 = vmatprep.subr.mxu0 0.0
        %450 = vmatpush1.msra.mxu0 0.0
        %451 = vmatprep.subr.mxu0 0.0
        %452 = vmatpush1.msra.mxu0 0.0
        %453 = vmatprep.subr.mxu0 0.0
        %454 = vmatpush1.msra.mxu0 0.0
        %455 = vmatprep.subr.mxu0 0.0
        %456 = vmatpush1.msra.mxu0 0.0
        %457 = vmatprep.subr.mxu0 0.0
        %458 = vmatpush1.msra.mxu0 0.0
        %459 = vmatprep.subr.mxu0 0.0
        %460 = vmatpush1.msra.mxu0 0.0
        %461 = vmatprep.subr.mxu0 0.0
        %462 = vmatpush1.msra.mxu0 0.0
        %463 = vmatprep.subr.mxu0 0.0
        %464 = vmatpush1.msra.mxu0 0.0
        %465 = vmatprep.subr.mxu0 0.0
        %466 = vmatpush1.msra.mxu0 0.0
        %467 = vmatprep.subr.mxu0 0.0
        %468 = vmatpush1.msra.mxu0 0.0
        %469 = vmatprep.subr.mxu0 0.0
        %470 = vmatpush1.msra.mxu0 0.0
        %471 = vmatprep.subr.mxu0 0.0
        %472 = vmatpush1.msra.mxu0 0.0
        %473 = vmatprep.subr.mxu0 0.0
        %474 = vmatpush1.msra.mxu0 0.0
        %475 = vmatprep.subr.mxu0 0.0
        %476 = vmatpush1.msra.mxu0 0.0
        %477 = vmatprep.subr.mxu0 0.0
        %478 = vmatpush1.msra.mxu0 0.0
        %479 = vmatprep.subr.mxu0 0.0
        %480 = vmatpush1.msra.mxu0 0.0
        %481 = vmatprep.subr.mxu0 0.0
        %482 = vmatpush1.msra.mxu0 0.0
        %483 = vmatprep.subr.mxu0 0.0
        %484 = vmatpush1.msra.mxu0 0.0
        %485 = vmatprep.subr.mxu0 0.0
        %486 = vmatpush1.msra.mxu0 0.0
        %487 = vmatprep.subr.mxu0 0.0
        %488 = vmatpush1.msra.mxu0 0.0
        %489 = vmatprep.subr.mxu0 0.0
        %490 = vmatpush1.msra.mxu0 0.0
        %491 = vmatprep.subr.mxu0 0.0
        %492 = vmatpush1.msra.mxu0 0.0
        %493 = vmatprep.subr.mxu0 0.0
        %494 = vmatpush1.msra.mxu0 0.0
        %495 = vmatprep.subr.mxu0 0.0
        %496 = vmatpush1.msra.mxu0 0.0
        %497 = vmatprep.subr.mxu0 0.0
        %498 = vmatpush1.msra.mxu0 0.0
        %499 = vmatprep.subr.mxu0 0.0
        %500 = vmatpush1.msra.mxu0 0.0
        %501 = vmatprep.subr.mxu0 0.0
        %502 = vmatpush1.msra.mxu0 0.0
        %503 = vmatprep.subr.mxu0 0.0
        %504 = vmatpush1.msra.mxu0 0.0
        %505 = vmatprep.subr.mxu0 0.0
        %506 = vmatpush1.msra.mxu0 0.0
        %507 = vmatprep.subr.mxu0 0.0
        %508 = vmatpush1.msra.mxu0 0.0
        %509 = vmatprep.mubr.f32.mxu0 0.0
        %v510 = vand.u32 %v356, 4294901760
        %511 = vmatmul.mubr.f32.gmra.mrb[0].mxu0 %v510
        %v512 = vpop.f32.mrb[0].mxu0
        %v513 = vadd.f32 %v432, %v512
        %v514 = vpop.f32.mrb[0].mxu0
        %515 = vdwg.mxu0
        %516 = vmatprep.subr.mxu0 0.0
        %v517 = vand.u32 %v352, 4294901760
        %v518 = vsub.f32 %v352, %v517
        %519 = vmatpush1.msra.mxu0 %v518
        %520 = vmatprep.subr.mxu0 0.0
        %v521 = vand.u32 %v353, 4294901760
        %v522 = vsub.f32 %v353, %v521
        %523 = vmatpush1.msra.mxu0 %v522
        %524 = vmatprep.subr.mxu0 0.0
        %525 = vmatpush1.msra.mxu0 0.0
        %526 = vmatprep.subr.mxu0 0.0
        %527 = vmatpush1.msra.mxu0 0.0
        %528 = vmatprep.subr.mxu0 0.0
        %529 = vmatpush1.msra.mxu0 0.0
        %530 = vmatprep.subr.mxu0 0.0
        %531 = vmatpush1.msra.mxu0 0.0
        %532 = vmatprep.subr.mxu0 0.0
        %533 = vmatpush1.msra.mxu0 0.0
        %534 = vmatprep.subr.mxu0 0.0
        %535 = vmatpush1.msra.mxu0 0.0
        %536 = vmatprep.subr.mxu0 0.0
        %537 = vmatpush1.msra.mxu0 0.0
        %538 = vmatprep.subr.mxu0 0.0
        %539 = vmatpush1.msra.mxu0 0.0
        %540 = vmatprep.subr.mxu0 0.0
        %541 = vmatpush1.msra.mxu0 0.0
        %542 = vmatprep.subr.mxu0 0.0
        %543 = vmatpush1.msra.mxu0 0.0
        %544 = vmatprep.subr.mxu0 0.0
        %545 = vmatpush1.msra.mxu0 0.0
        %546 = vmatprep.subr.mxu0 0.0
        %547 = vmatpush1.msra.mxu0 0.0
        %548 = vmatprep.subr.mxu0 0.0
        %549 = vmatpush1.msra.mxu0 0.0
        %550 = vmatprep.subr.mxu0 0.0
        %551 = vmatpush1.msra.mxu0 0.0
        %552 = vmatprep.subr.mxu0 0.0
        %553 = vmatpush1.msra.mxu0 0.0
        %554 = vmatprep.subr.mxu0 0.0
        %555 = vmatpush1.msra.mxu0 0.0
        %556 = vmatprep.subr.mxu0 0.0
        %557 = vmatpush1.msra.mxu0 0.0
        %558 = vmatprep.subr.mxu0 0.0
        %559 = vmatpush1.msra.mxu0 0.0
        %560 = vmatprep.subr.mxu0 0.0
        %561 = vmatpush1.msra.mxu0 0.0
        %562 = vmatprep.subr.mxu0 0.0
        %563 = vmatpush1.msra.mxu0 0.0
        %564 = vmatprep.subr.mxu0 0.0
        %565 = vmatpush1.msra.mxu0 0.0
        %566 = vmatprep.subr.mxu0 0.0
        %567 = vmatpush1.msra.mxu0 0.0
        %568 = vmatprep.subr.mxu0 0.0
        %569 = vmatpush1.msra.mxu0 0.0
        %570 = vmatprep.subr.mxu0 0.0
        %571 = vmatpush1.msra.mxu0 0.0
        %572 = vmatprep.subr.mxu0 0.0
        %573 = vmatpush1.msra.mxu0 0.0
        %574 = vmatprep.subr.mxu0 0.0
        %575 = vmatpush1.msra.mxu0 0.0
        %576 = vmatprep.subr.mxu0 0.0
        %577 = vmatpush1.msra.mxu0 0.0
        %578 = vmatprep.subr.mxu0 0.0
        %579 = vmatpush1.msra.mxu0 0.0
        %580 = vmatprep.subr.mxu0 0.0
        %581 = vmatpush1.msra.mxu0 0.0
        %582 = vmatprep.subr.mxu0 0.0
        %583 = vmatpush1.msra.mxu0 0.0
        %584 = vmatprep.mubr.f32.mxu0 0.0
        %v585 = vand.u32 %v356, 4294901760
        %v586 = vsub.f32 %v356, %v585
        %587 = vmatmul.mubr.f32.gmra.mrb[0].mxu0 %v586
        %v588 = vpop.f32.mrb[0].mxu0
        %v589 = vadd.f32 %v513, %v588
        %v590 = vpop.f32.mrb[0].mxu0
        %591 = vdwg.mxu0
        %592 = vmatprep.subr.mxu0 0.0
        %v593 = vand.u32 %v352, 4294901760
        %594 = vmatpush1.msra.mxu0 %v593
        %595 = vmatprep.subr.mxu0 0.0
        %v596 = vand.u32 %v353, 4294901760
        %597 = vmatpush1.msra.mxu0 %v596
        %598 = vmatprep.subr.mxu0 0.0
        %599 = vmatpush1.msra.mxu0 0.0
        %600 = vmatprep.subr.mxu0 0.0
        %601 = vmatpush1.msra.mxu0 0.0
        %602 = vmatprep.subr.mxu0 0.0
        %603 = vmatpush1.msra.mxu0 0.0
        %604 = vmatprep.subr.mxu0 0.0
        %605 = vmatpush1.msra.mxu0 0.0
        %606 = vmatprep.subr.mxu0 0.0
        %607 = vmatpush1.msra.mxu0 0.0
        %608 = vmatprep.subr.mxu0 0.0
        %609 = vmatpush1.msra.mxu0 0.0
        %610 = vmatprep.subr.mxu0 0.0
        %611 = vmatpush1.msra.mxu0 0.0
        %612 = vmatprep.subr.mxu0 0.0
        %613 = vmatpush1.msra.mxu0 0.0
        %614 = vmatprep.subr.mxu0 0.0
        %615 = vmatpush1.msra.mxu0 0.0
        %616 = vmatprep.subr.mxu0 0.0
        %617 = vmatpush1.msra.mxu0 0.0
        %618 = vmatprep.subr.mxu0 0.0
        %619 = vmatpush1.msra.mxu0 0.0
        %620 = vmatprep.subr.mxu0 0.0
        %621 = vmatpush1.msra.mxu0 0.0
        %622 = vmatprep.subr.mxu0 0.0
        %623 = vmatpush1.msra.mxu0 0.0
        %624 = vmatprep.subr.mxu0 0.0
        %625 = vmatpush1.msra.mxu0 0.0
        %626 = vmatprep.subr.mxu0 0.0
        %627 = vmatpush1.msra.mxu0 0.0
        %628 = vmatprep.subr.mxu0 0.0
        %629 = vmatpush1.msra.mxu0 0.0
        %630 = vmatprep.subr.mxu0 0.0
        %631 = vmatpush1.msra.mxu0 0.0
        %632 = vmatprep.subr.mxu0 0.0
        %633 = vmatpush1.msra.mxu0 0.0
        %634 = vmatprep.subr.mxu0 0.0
        %635 = vmatpush1.msra.mxu0 0.0
        %636 = vmatprep.subr.mxu0 0.0
        %637 = vmatpush1.msra.mxu0 0.0
        %638 = vmatprep.subr.mxu0 0.0
        %639 = vmatpush1.msra.mxu0 0.0
        %640 = vmatprep.subr.mxu0 0.0
        %641 = vmatpush1.msra.mxu0 0.0
        %642 = vmatprep.subr.mxu0 0.0
        %643 = vmatpush1.msra.mxu0 0.0
        %644 = vmatprep.subr.mxu0 0.0
        %645 = vmatpush1.msra.mxu0 0.0
        %646 = vmatprep.subr.mxu0 0.0
        %647 = vmatpush1.msra.mxu0 0.0
        %648 = vmatprep.subr.mxu0 0.0
        %649 = vmatpush1.msra.mxu0 0.0
        %650 = vmatprep.subr.mxu0 0.0
        %651 = vmatpush1.msra.mxu0 0.0
        %652 = vmatprep.subr.mxu0 0.0
        %653 = vmatpush1.msra.mxu0 0.0
        %654 = vmatprep.subr.mxu0 0.0
        %655 = vmatpush1.msra.mxu0 0.0
        %656 = vmatprep.subr.mxu0 0.0
        %657 = vmatpush1.msra.mxu0 0.0
        %658 = vmatprep.mubr.f32.mxu0 0.0
        %v659 = vand.u32 %v356, 4294901760
        %v660 = vsub.f32 %v356, %v659
        %v661 = vand.u32 %v660, 4294901760
        %662 = vmatmul.mubr.f32.gmra.mrb[0].mxu0 %v661
        %v663 = vpop.f32.mrb[0].mxu0
        %v664 = vadd.f32 %v589, %v663
        %v665 = vpop.f32.mrb[0].mxu0
        %666 = vdwg.mxu0
        %667 = vmatprep.subr.mxu0 0.0
        %v668 = vand.u32 %v352, 4294901760
        %v669 = vsub.f32 %v352, %v668
        %v670 = vand.u32 %v669, 4294901760
        %671 = vmatpush1.msra.mxu0 %v670
        %672 = vmatprep.subr.mxu0 0.0
        %v673 = vand.u32 %v353, 4294901760
        %v674 = vsub.f32 %v353, %v673
        %v675 = vand.u32 %v674, 4294901760
        %676 = vmatpush1.msra.mxu0 %v675
        %677 = vmatprep.subr.mxu0 0.0
        %678 = vmatpush1.msra.mxu0 0.0
        %679 = vmatprep.subr.mxu0 0.0
        %680 = vmatpush1.msra.mxu0 0.0
        %681 = vmatprep.subr.mxu0 0.0
        %682 = vmatpush1.msra.mxu0 0.0
        %683 = vmatprep.subr.mxu0 0.0
        %684 = vmatpush1.msra.mxu0 0.0
        %685 = vmatprep.subr.mxu0 0.0
        %686 = vmatpush1.msra.mxu0 0.0
        %687 = vmatprep.subr.mxu0 0.0
        %688 = vmatpush1.msra.mxu0 0.0
        %689 = vmatprep.subr.mxu0 0.0
        %690 = vmatpush1.msra.mxu0 0.0
        %691 = vmatprep.subr.mxu0 0.0
        %692 = vmatpush1.msra.mxu0 0.0
        %693 = vmatprep.subr.mxu0 0.0
        %694 = vmatpush1.msra.mxu0 0.0
        %695 = vmatprep.subr.mxu0 0.0
        %696 = vmatpush1.msra.mxu0 0.0
        %697 = vmatprep.subr.mxu0 0.0
        %698 = vmatpush1.msra.mxu0 0.0
        %699 = vmatprep.subr.mxu0 0.0
        %700 = vmatpush1.msra.mxu0 0.0
        %701 = vmatprep.subr.mxu0 0.0
        %702 = vmatpush1.msra.mxu0 0.0
        %703 = vmatprep.subr.mxu0 0.0
        %704 = vmatpush1.msra.mxu0 0.0
        %705 = vmatprep.subr.mxu0 0.0
        %706 = vmatpush1.msra.mxu0 0.0
        %707 = vmatprep.subr.mxu0 0.0
        %708 = vmatpush1.msra.mxu0 0.0
        %709 = vmatprep.subr.mxu0 0.0
        %710 = vmatpush1.msra.mxu0 0.0
        %711 = vmatprep.subr.mxu0 0.0
        %712 = vmatpush1.msra.mxu0 0.0
        %713 = vmatprep.subr.mxu0 0.0
        %714 = vmatpush1.msra.mxu0 0.0
        %715 = vmatprep.subr.mxu0 0.0
        %716 = vmatpush1.msra.mxu0 0.0
        %717 = vmatprep.subr.mxu0 0.0
        %718 = vmatpush1.msra.mxu0 0.0
        %719 = vmatprep.subr.mxu0 0.0
        %720 = vmatpush1.msra.mxu0 0.0
        %721 = vmatprep.subr.mxu0 0.0
        %722 = vmatpush1.msra.mxu0 0.0
        %723 = vmatprep.subr.mxu0 0.0
        %724 = vmatpush1.msra.mxu0 0.0
        %725 = vmatprep.subr.mxu0 0.0
        %726 = vmatpush1.msra.mxu0 0.0
        %727 = vmatprep.subr.mxu0 0.0
        %728 = vmatpush1.msra.mxu0 0.0
        %729 = vmatprep.subr.mxu0 0.0
        %730 = vmatpush1.msra.mxu0 0.0
        %731 = vmatprep.subr.mxu0 0.0
        %732 = vmatpush1.msra.mxu0 0.0
        %733 = vmatprep.subr.mxu0 0.0
        %734 = vmatpush1.msra.mxu0 0.0
        %735 = vmatprep.subr.mxu0 0.0
        %736 = vmatpush1.msra.mxu0 0.0
        %737 = vmatprep.mubr.f32.mxu0 0.0
        %v738 = vand.u32 %v356, 4294901760
        %739 = vmatmul.mubr.f32.gmra.mrb[0].mxu0 %v738
        %v740 = vpop.f32.mrb[0].mxu0
        %v741 = vadd.f32 %v664, %v740
        %v742 = vpop.f32.mrb[0].mxu0
        %743 = vdwg.mxu0
        %744 = vmatprep.subr.mxu0 0.0
        %v745 = vand.u32 %v352, 4294901760
        %746 = vmatpush1.msra.mxu0 %v745
        %747 = vmatprep.subr.mxu0 0.0
        %v748 = vand.u32 %v353, 4294901760
        %749 = vmatpush1.msra.mxu0 %v748
        %750 = vmatprep.subr.mxu0 0.0
        %751 = vmatpush1.msra.mxu0 0.0
        %752 = vmatprep.subr.mxu0 0.0
        %753 = vmatpush1.msra.mxu0 0.0
        %754 = vmatprep.subr.mxu0 0.0
        %755 = vmatpush1.msra.mxu0 0.0
        %756 = vmatprep.subr.mxu0 0.0
        %757 = vmatpush1.msra.mxu0 0.0
        %758 = vmatprep.subr.mxu0 0.0
        %759 = vmatpush1.msra.mxu0 0.0
        %760 = vmatprep.subr.mxu0 0.0
        %761 = vmatpush1.msra.mxu0 0.0
        %762 = vmatprep.subr.mxu0 0.0
        %763 = vmatpush1.msra.mxu0 0.0
        %764 = vmatprep.subr.mxu0 0.0
        %765 = vmatpush1.msra.mxu0 0.0
        %766 = vmatprep.subr.mxu0 0.0
        %767 = vmatpush1.msra.mxu0 0.0
        %768 = vmatprep.subr.mxu0 0.0
        %769 = vmatpush1.msra.mxu0 0.0
        %770 = vmatprep.subr.mxu0 0.0
        %771 = vmatpush1.msra.mxu0 0.0
        %772 = vmatprep.subr.mxu0 0.0
        %773 = vmatpush1.msra.mxu0 0.0
        %774 = vmatprep.subr.mxu0 0.0
        %775 = vmatpush1.msra.mxu0 0.0
        %776 = vmatprep.subr.mxu0 0.0
        %777 = vmatpush1.msra.mxu0 0.0
        %778 = vmatprep.subr.mxu0 0.0
        %779 = vmatpush1.msra.mxu0 0.0
        %780 = vmatprep.subr.mxu0 0.0
        %781 = vmatpush1.msra.mxu0 0.0
        %782 = vmatprep.subr.mxu0 0.0
        %783 = vmatpush1.msra.mxu0 0.0
        %784 = vmatprep.subr.mxu0 0.0
        %785 = vmatpush1.msra.mxu0 0.0
        %786 = vmatprep.subr.mxu0 0.0
        %787 = vmatpush1.msra.mxu0 0.0
        %788 = vmatprep.subr.mxu0 0.0
        %789 = vmatpush1.msra.mxu0 0.0
        %790 = vmatprep.subr.mxu0 0.0
        %791 = vmatpush1.msra.mxu0 0.0
        %792 = vmatprep.subr.mxu0 0.0
        %793 = vmatpush1.msra.mxu0 0.0
        %794 = vmatprep.subr.mxu0 0.0
        %795 = vmatpush1.msra.mxu0 0.0
        %796 = vmatprep.subr.mxu0 0.0
        %797 = vmatpush1.msra.mxu0 0.0
        %798 = vmatprep.subr.mxu0 0.0
        %799 = vmatpush1.msra.mxu0 0.0
        %800 = vmatprep.subr.mxu0 0.0
        %801 = vmatpush1.msra.mxu0 0.0
        %802 = vmatprep.subr.mxu0 0.0
        %803 = vmatpush1.msra.mxu0 0.0
        %804 = vmatprep.subr.mxu0 0.0
        %805 = vmatpush1.msra.mxu0 0.0
        %806 = vmatprep.subr.mxu0 0.0
        %807 = vmatpush1.msra.mxu0 0.0
        %808 = vmatprep.subr.mxu0 0.0
        %809 = vmatpush1.msra.mxu0 0.0
        %810 = vmatprep.mubr.f32.mxu0 0.0
        %v811 = vand.u32 %v356, 4294901760
        %812 = vmatmul.mubr.f32.gmra.mrb[0].mxu0 %v811
        %v813 = vpop.f32.mrb[0].mxu0
        %v814 = vadd.f32 %v741, %v813
        %v815 = vpop.f32.mrb[0].mxu0
        %816 = vdwg.mxu0
        %v818 = vsel %vm354, %v348, 0
        %820 = vmatprep.subr.mxu0 0.0
        %v821 = vand.u32 %v349, 4294901760
        %822 = vmatpush1.msra.mxu0 %v821
        %823 = vmatprep.subr.mxu0 0.0
        %v824 = vand.u32 %v350, 4294901760
        %825 = vmatpush1.msra.mxu0 %v824
        %826 = vmatprep.subr.mxu0 0.0
        %827 = vmatpush1.msra.mxu0 0.0
        %828 = vmatprep.subr.mxu0 0.0
        %829 = vmatpush1.msra.mxu0 0.0
        %830 = vmatprep.subr.mxu0 0.0
        %831 = vmatpush1.msra.mxu0 0.0
        %832 = vmatprep.subr.mxu0 0.0
        %833 = vmatpush1.msra.mxu0 0.0
        %834 = vmatprep.subr.mxu0 0.0
        %835 = vmatpush1.msra.mxu0 0.0
        %836 = vmatprep.subr.mxu0 0.0
        %837 = vmatpush1.msra.mxu0 0.0
        %838 = vmatprep.subr.mxu0 0.0
        %839 = vmatpush1.msra.mxu0 0.0
        %840 = vmatprep.subr.mxu0 0.0
        %841 = vmatpush1.msra.mxu0 0.0
        %842 = vmatprep.subr.mxu0 0.0
        %843 = vmatpush1.msra.mxu0 0.0
        %844 = vmatprep.subr.mxu0 0.0
        %845 = vmatpush1.msra.mxu0 0.0
        %846 = vmatprep.subr.mxu0 0.0
        %847 = vmatpush1.msra.mxu0 0.0
        %848 = vmatprep.subr.mxu0 0.0
        %849 = vmatpush1.msra.mxu0 0.0
        %850 = vmatprep.subr.mxu0 0.0
        %851 = vmatpush1.msra.mxu0 0.0
        %852 = vmatprep.subr.mxu0 0.0
        %853 = vmatpush1.msra.mxu0 0.0
        %854 = vmatprep.subr.mxu0 0.0
        %855 = vmatpush1.msra.mxu0 0.0
        %856 = vmatprep.subr.mxu0 0.0
        %857 = vmatpush1.msra.mxu0 0.0
        %858 = vmatprep.subr.mxu0 0.0
        %859 = vmatpush1.msra.mxu0 0.0
        %860 = vmatprep.subr.mxu0 0.0
        %861 = vmatpush1.msra.mxu0 0.0
        %862 = vmatprep.subr.mxu0 0.0
        %863 = vmatpush1.msra.mxu0 0.0
        %864 = vmatprep.subr.mxu0 0.0
        %865 = vmatpush1.msra.mxu0 0.0
        %866 = vmatprep.subr.mxu0 0.0
        %867 = vmatpush1.msra.mxu0 0.0
        %868 = vmatprep.subr.mxu0 0.0
        %869 = vmatpush1.msra.mxu0 0.0
        %870 = vmatprep.subr.mxu0 0.0
        %871 = vmatpush1.msra.mxu0 0.0
        %872 = vmatprep.subr.mxu0 0.0
        %873 = vmatpush1.msra.mxu0 0.0
        %874 = vmatprep.subr.mxu0 0.0
        %875 = vmatpush1.msra.mxu0 0.0
        %876 = vmatprep.subr.mxu0 0.0
        %877 = vmatpush1.msra.mxu0 0.0
        %878 = vmatprep.subr.mxu0 0.0
        %879 = vmatpush1.msra.mxu0 0.0
        %880 = vmatprep.subr.mxu0 0.0
        %881 = vmatpush1.msra.mxu0 0.0
        %882 = vmatprep.subr.mxu0 0.0
        %883 = vmatpush1.msra.mxu0 0.0
        %884 = vmatprep.subr.mxu0 0.0
        %885 = vmatpush1.msra.mxu0 0.0
        %886 = vmatprep.mubr.f32.mxu0 0.0
        %v887 = vand.u32 %v818, 4294901760
        %v888 = vsub.f32 %v818, %v887
        %v889 = vand.u32 %v888, 4294901760
        %v890 = vsub.f32 %v888, %v889
        %v891 = vand.u32 %v890, 4294901760
        %892 = vmatmul.mubr.f32.gmra.mrb[0].mxu0 %v891
        %v893 = vpop.f32.mrb[0].mxu0
        %v894 = vadd.f32 %v814, %v893
        %v895 = vpop.f32.mrb[0].mxu0
        %896 = vdwg.mxu0
        %897 = vmatprep.subr.mxu0 0.0
        %v898 = vand.u32 %v349, 4294901760
        %v899 = vsub.f32 %v349, %v898
        %v900 = vand.u32 %v899, 4294901760
        %v901 = vsub.f32 %v899, %v900
        %v902 = vand.u32 %v901, 4294901760
        %903 = vmatpush1.msra.mxu0 %v902
        %904 = vmatprep.subr.mxu0 0.0
        %v905 = vand.u32 %v350, 4294901760
        %v906 = vsub.f32 %v350, %v905
        %v907 = vand.u32 %v906, 4294901760
        %v908 = vsub.f32 %v906, %v907
        %v909 = vand.u32 %v908, 4294901760
        %910 = vmatpush1.msra.mxu0 %v909
        %911 = vmatprep.subr.mxu0 0.0
        %912 = vmatpush1.msra.mxu0 0.0
        %913 = vmatprep.subr.mxu0 0.0
        %914 = vmatpush1.msra.mxu0 0.0
        %915 = vmatprep.subr.mxu0 0.0
        %916 = vmatpush1.msra.mxu0 0.0
        %917 = vmatprep.subr.mxu0 0.0
        %918 = vmatpush1.msra.mxu0 0.0
        %919 = vmatprep.subr.mxu0 0.0
        %920 = vmatpush1.msra.mxu0 0.0
        %921 = vmatprep.subr.mxu0 0.0
        %922 = vmatpush1.msra.mxu0 0.0
        %923 = vmatprep.subr.mxu0 0.0
        %924 = vmatpush1.msra.mxu0 0.0
        %925 = vmatprep.subr.mxu0 0.0
        %926 = vmatpush1.msra.mxu0 0.0
        %927 = vmatprep.subr.mxu0 0.0
        %928 = vmatpush1.msra.mxu0 0.0
        %929 = vmatprep.subr.mxu0 0.0
        %930 = vmatpush1.msra.mxu0 0.0
        %931 = vmatprep.subr.mxu0 0.0
        %932 = vmatpush1.msra.mxu0 0.0
        %933 = vmatprep.subr.mxu0 0.0
        %934 = vmatpush1.msra.mxu0 0.0
        %935 = vmatprep.subr.mxu0 0.0
        %936 = vmatpush1.msra.mxu0 0.0
        %937 = vmatprep.subr.mxu0 0.0
        %938 = vmatpush1.msra.mxu0 0.0
        %939 = vmatprep.subr.mxu0 0.0
        %940 = vmatpush1.msra.mxu0 0.0
        %941 = vmatprep.subr.mxu0 0.0
        %942 = vmatpush1.msra.mxu0 0.0
        %943 = vmatprep.subr.mxu0 0.0
        %944 = vmatpush1.msra.mxu0 0.0
        %945 = vmatprep.subr.mxu0 0.0
        %946 = vmatpush1.msra.mxu0 0.0
        %947 = vmatprep.subr.mxu0 0.0
        %948 = vmatpush1.msra.mxu0 0.0
        %949 = vmatprep.subr.mxu0 0.0
        %950 = vmatpush1.msra.mxu0 0.0
        %951 = vmatprep.subr.mxu0 0.0
        %952 = vmatpush1.msra.mxu0 0.0
        %953 = vmatprep.subr.mxu0 0.0
        %954 = vmatpush1.msra.mxu0 0.0
        %955 = vmatprep.subr.mxu0 0.0
        %956 = vmatpush1.msra.mxu0 0.0
        %957 = vmatprep.subr.mxu0 0.0
        %958 = vmatpush1.msra.mxu0 0.0
        %959 = vmatprep.subr.mxu0 0.0
        %960 = vmatpush1.msra.mxu0 0.0
        %961 = vmatprep.subr.mxu0 0.0
        %962 = vmatpush1.msra.mxu0 0.0
        %963 = vmatprep.subr.mxu0 0.0
        %964 = vmatpush1.msra.mxu0 0.0
        %965 = vmatprep.subr.mxu0 0.0
        %966 = vmatpush1.msra.mxu0 0.0
        %967 = vmatprep.subr.mxu0 0.0
        %968 = vmatpush1.msra.mxu0 0.0
        %969 = vmatprep.subr.mxu0 0.0
        %970 = vmatpush1.msra.mxu0 0.0
        %971 = vmatprep.mubr.f32.mxu0 0.0
        %v972 = vand.u32 %v818, 4294901760
        %973 = vmatmul.mubr.f32.gmra.mrb[0].mxu0 %v972
        %v974 = vpop.f32.mrb[0].mxu0
        %v975 = vadd.f32 %v894, %v974
        %v976 = vpop.f32.mrb[0].mxu0
        %977 = vdwg.mxu0
        %978 = vmatprep.subr.mxu0 0.0
        %v979 = vand.u32 %v349, 4294901760
        %v980 = vsub.f32 %v349, %v979
        %981 = vmatpush1.msra.mxu0 %v980
        %982 = vmatprep.subr.mxu0 0.0
        %v983 = vand.u32 %v350, 4294901760
        %v984 = vsub.f32 %v350, %v983
        %985 = vmatpush1.msra.mxu0 %v984
        %986 = vmatprep.subr.mxu0 0.0
        %987 = vmatpush1.msra.mxu0 0.0
        %988 = vmatprep.subr.mxu0 0.0
        %989 = vmatpush1.msra.mxu0 0.0
        %990 = vmatprep.subr.mxu0 0.0
        %991 = vmatpush1.msra.mxu0 0.0
        %992 = vmatprep.subr.mxu0 0.0
        %993 = vmatpush1.msra.mxu0 0.0
        %994 = vmatprep.subr.mxu0 0.0
        %995 = vmatpush1.msra.mxu0 0.0
        %996 = vmatprep.subr.mxu0 0.0
        %997 = vmatpush1.msra.mxu0 0.0
        %998 = vmatprep.subr.mxu0 0.0
        %999 = vmatpush1.msra.mxu0 0.0
        %1000 = vmatprep.subr.mxu0 0.0
        %1001 = vmatpush1.msra.mxu0 0.0
        %1002 = vmatprep.subr.mxu0 0.0
        %1003 = vmatpush1.msra.mxu0 0.0
        %1004 = vmatprep.subr.mxu0 0.0
        %1005 = vmatpush1.msra.mxu0 0.0
        %1006 = vmatprep.subr.mxu0 0.0
        %1007 = vmatpush1.msra.mxu0 0.0
        %1008 = vmatprep.subr.mxu0 0.0
        %1009 = vmatpush1.msra.mxu0 0.0
        %1010 = vmatprep.subr.mxu0 0.0
        %1011 = vmatpush1.msra.mxu0 0.0
        %1012 = vmatprep.subr.mxu0 0.0
        %1013 = vmatpush1.msra.mxu0 0.0
        %1014 = vmatprep.subr.mxu0 0.0
        %1015 = vmatpush1.msra.mxu0 0.0
        %1016 = vmatprep.subr.mxu0 0.0
        %1017 = vmatpush1.msra.mxu0 0.0
        %1018 = vmatprep.subr.mxu0 0.0
        %1019 = vmatpush1.msra.mxu0 0.0
        %1020 = vmatprep.subr.mxu0 0.0
        %1021 = vmatpush1.msra.mxu0 0.0
        %1022 = vmatprep.subr.mxu0 0.0
        %1023 = vmatpush1.msra.mxu0 0.0
        %1024 = vmatprep.subr.mxu0 0.0
        %1025 = vmatpush1.msra.mxu0 0.0
        %1026 = vmatprep.subr.mxu0 0.0
        %1027 = vmatpush1.msra.mxu0 0.0
        %1028 = vmatprep.subr.mxu0 0.0
        %1029 = vmatpush1.msra.mxu0 0.0
        %1030 = vmatprep.subr.mxu0 0.0
        %1031 = vmatpush1.msra.mxu0 0.0
        %1032 = vmatprep.subr.mxu0 0.0
        %1033 = vmatpush1.msra.mxu0 0.0
        %1034 = vmatprep.subr.mxu0 0.0
        %1035 = vmatpush1.msra.mxu0 0.0
        %1036 = vmatprep.subr.mxu0 0.0
        %1037 = vmatpush1.msra.mxu0 0.0
        %1038 = vmatprep.subr.mxu0 0.0
        %1039 = vmatpush1.msra.mxu0 0.0
        %1040 = vmatprep.subr.mxu0 0.0
        %1041 = vmatpush1.msra.mxu0 0.0
        %1042 = vmatprep.subr.mxu0 0.0
        %1043 = vmatpush1.msra.mxu0 0.0
        %1044 = vmatprep.subr.mxu0 0.0
        %1045 = vmatpush1.msra.mxu0 0.0
        %1046 = vmatprep.mubr.f32.mxu0 0.0
        %v1047 = vand.u32 %v818, 4294901760
        %v1048 = vsub.f32 %v818, %v1047
        %1049 = vmatmul.mubr.f32.gmra.mrb[0].mxu0 %v1048
        %v1050 = vpop.f32.mrb[0].mxu0
        %v1051 = vadd.f32 %v975, %v1050
        %v1052 = vpop.f32.mrb[0].mxu0
        %1053 = vdwg.mxu0
        %1054 = vmatprep.subr.mxu0 0.0
        %v1055 = vand.u32 %v349, 4294901760
        %1056 = vmatpush1.msra.mxu0 %v1055
        %1057 = vmatprep.subr.mxu0 0.0
        %v1058 = vand.u32 %v350, 4294901760
        %1059 = vmatpush1.msra.mxu0 %v1058
        %1060 = vmatprep.subr.mxu0 0.0
        %1061 = vmatpush1.msra.mxu0 0.0
        %1062 = vmatprep.subr.mxu0 0.0
        %1063 = vmatpush1.msra.mxu0 0.0
        %1064 = vmatprep.subr.mxu0 0.0
        %1065 = vmatpush1.msra.mxu0 0.0
        %1066 = vmatprep.subr.mxu0 0.0
        %1067 = vmatpush1.msra.mxu0 0.0
        %1068 = vmatprep.subr.mxu0 0.0
        %1069 = vmatpush1.msra.mxu0 0.0
        %1070 = vmatprep.subr.mxu0 0.0
        %1071 = vmatpush1.msra.mxu0 0.0
        %1072 = vmatprep.subr.mxu0 0.0
        %1073 = vmatpush1.msra.mxu0 0.0
        %1074 = vmatprep.subr.mxu0 0.0
        %1075 = vmatpush1.msra.mxu0 0.0
        %1076 = vmatprep.subr.mxu0 0.0
        %1077 = vmatpush1.msra.mxu0 0.0
        %1078 = vmatprep.subr.mxu0 0.0
        %1079 = vmatpush1.msra.mxu0 0.0
        %1080 = vmatprep.subr.mxu0 0.0
        %1081 = vmatpush1.msra.mxu0 0.0
        %1082 = vmatprep.subr.mxu0 0.0
        %1083 = vmatpush1.msra.mxu0 0.0
        %1084 = vmatprep.subr.mxu0 0.0
        %1085 = vmatpush1.msra.mxu0 0.0
        %1086 = vmatprep.subr.mxu0 0.0
        %1087 = vmatpush1.msra.mxu0 0.0
        %1088 = vmatprep.subr.mxu0 0.0
        %1089 = vmatpush1.msra.mxu0 0.0
        %1090 = vmatprep.subr.mxu0 0.0
        %1091 = vmatpush1.msra.mxu0 0.0
        %1092 = vmatprep.subr.mxu0 0.0
        %1093 = vmatpush1.msra.mxu0 0.0
        %1094 = vmatprep.subr.mxu0 0.0
        %1095 = vmatpush1.msra.mxu0 0.0
        %1096 = vmatprep.subr.mxu0 0.0
        %1097 = vmatpush1.msra.mxu0 0.0
        %1098 = vmatprep.subr.mxu0 0.0
        %1099 = vmatpush1.msra.mxu0 0.0
        %1100 = vmatprep.subr.mxu0 0.0
        %1101 = vmatpush1.msra.mxu0 0.0
        %1102 = vmatprep.subr.mxu0 0.0
        %1103 = vmatpush1.msra.mxu0 0.0
        %1104 = vmatprep.subr.mxu0 0.0
        %1105 = vmatpush1.msra.mxu0 0.0
        %1106 = vmatprep.subr.mxu0 0.0
        %1107 = vmatpush1.msra.mxu0 0.0
        %1108 = vmatprep.subr.mxu0 0.0
        %1109 = vmatpush1.msra.mxu0 0.0
        %1110 = vmatprep.subr.mxu0 0.0
        %1111 = vmatpush1.msra.mxu0 0.0
        %1112 = vmatprep.subr.mxu0 0.0
        %1113 = vmatpush1.msra.mxu0 0.0
        %1114 = vmatprep.subr.mxu0 0.0
        %1115 = vmatpush1.msra.mxu0 0.0
        %1116 = vmatprep.subr.mxu0 0.0
        %1117 = vmatpush1.msra.mxu0 0.0
        %1118 = vmatprep.subr.mxu0 0.0
        %1119 = vmatpush1.msra.mxu0 0.0
        %1120 = vmatprep.mubr.f32.mxu0 0.0
        %v1121 = vand.u32 %v818, 4294901760
        %v1122 = vsub.f32 %v818, %v1121
        %v1123 = vand.u32 %v1122, 4294901760
        %1124 = vmatmul.mubr.f32.gmra.mrb[0].mxu0 %v1123
        %v1125 = vpop.f32.mrb[0].mxu0
        %v1126 = vadd.f32 %v1051, %v1125
        %v1127 = vpop.f32.mrb[0].mxu0
        %1128 = vdwg.mxu0
        %1129 = vmatprep.subr.mxu0 0.0
        %v1130 = vand.u32 %v349, 4294901760
        %v1131 = vsub.f32 %v349, %v1130
        %v1132 = vand.u32 %v1131, 4294901760
        %1133 = vmatpush1.msra.mxu0 %v1132
        %1134 = vmatprep.subr.mxu0 0.0
        %v1135 = vand.u32 %v350, 4294901760
        %v1136 = vsub.f32 %v350, %v1135
        %v1137 = vand.u32 %v1136, 4294901760
        %1138 = vmatpush1.msra.mxu0 %v1137
        %1139 = vmatprep.subr.mxu0 0.0
        %1140 = vmatpush1.msra.mxu0 0.0
        %1141 = vmatprep.subr.mxu0 0.0
        %1142 = vmatpush1.msra.mxu0 0.0
        %1143 = vmatprep.subr.mxu0 0.0
        %1144 = vmatpush1.msra.mxu0 0.0
        %1145 = vmatprep.subr.mxu0 0.0
        %1146 = vmatpush1.msra.mxu0 0.0
        %1147 = vmatprep.subr.mxu0 0.0
        %1148 = vmatpush1.msra.mxu0 0.0
        %1149 = vmatprep.subr.mxu0 0.0
        %1150 = vmatpush1.msra.mxu0 0.0
        %1151 = vmatprep.subr.mxu0 0.0
        %1152 = vmatpush1.msra.mxu0 0.0
        %1153 = vmatprep.subr.mxu0 0.0
        %1154 = vmatpush1.msra.mxu0 0.0
        %1155 = vmatprep.subr.mxu0 0.0
        %1156 = vmatpush1.msra.mxu0 0.0
        %1157 = vmatprep.subr.mxu0 0.0
        %1158 = vmatpush1.msra.mxu0 0.0
        %1159 = vmatprep.subr.mxu0 0.0
        %1160 = vmatpush1.msra.mxu0 0.0
        %1161 = vmatprep.subr.mxu0 0.0
        %1162 = vmatpush1.msra.mxu0 0.0
        %1163 = vmatprep.subr.mxu0 0.0
        %1164 = vmatpush1.msra.mxu0 0.0
        %1165 = vmatprep.subr.mxu0 0.0
        %1166 = vmatpush1.msra.mxu0 0.0
        %1167 = vmatprep.subr.mxu0 0.0
        %1168 = vmatpush1.msra.mxu0 0.0
        %1169 = vmatprep.subr.mxu0 0.0
        %1170 = vmatpush1.msra.mxu0 0.0
        %1171 = vmatprep.subr.mxu0 0.0
        %1172 = vmatpush1.msra.mxu0 0.0
        %1173 = vmatprep.subr.mxu0 0.0
        %1174 = vmatpush1.msra.mxu0 0.0
        %1175 = vmatprep.subr.mxu0 0.0
        %1176 = vmatpush1.msra.mxu0 0.0
        %1177 = vmatprep.subr.mxu0 0.0
        %1178 = vmatpush1.msra.mxu0 0.0
        %1179 = vmatprep.subr.mxu0 0.0
        %1180 = vmatpush1.msra.mxu0 0.0
        %1181 = vmatprep.subr.mxu0 0.0
        %1182 = vmatpush1.msra.mxu0 0.0
        %1183 = vmatprep.subr.mxu0 0.0
        %1184 = vmatpush1.msra.mxu0 0.0
        %1185 = vmatprep.subr.mxu0 0.0
        %1186 = vmatpush1.msra.mxu0 0.0
        %1187 = vmatprep.subr.mxu0 0.0
        %1188 = vmatpush1.msra.mxu0 0.0
        %1189 = vmatprep.subr.mxu0 0.0
        %1190 = vmatpush1.msra.mxu0 0.0
        %1191 = vmatprep.subr.mxu0 0.0
        %1192 = vmatpush1.msra.mxu0 0.0
        %1193 = vmatprep.subr.mxu0 0.0
        %1194 = vmatpush1.msra.mxu0 0.0
        %1195 = vmatprep.subr.mxu0 0.0
        %1196 = vmatpush1.msra.mxu0 0.0
        %1197 = vmatprep.subr.mxu0 0.0
        %1198 = vmatpush1.msra.mxu0 0.0
        %1199 = vmatprep.mubr.f32.mxu0 0.0
        %v1200 = vand.u32 %v818, 4294901760
        %1201 = vmatmul.mubr.f32.gmra.mrb[0].mxu0 %v1200
        %v1202 = vpop.f32.mrb[0].mxu0
        %v1203 = vadd.f32 %v1126, %v1202
        %v1204 = vpop.f32.mrb[0].mxu0
        %1205 = vdwg.mxu0
        %1206 = vmatprep.subr.mxu0 0.0
        %v1207 = vand.u32 %v349, 4294901760
        %1208 = vmatpush1.msra.mxu0 %v1207
        %1209 = vmatprep.subr.mxu0 0.0
        %v1210 = vand.u32 %v350, 4294901760
        %1211 = vmatpush1.msra.mxu0 %v1210
        %1212 = vmatprep.subr.mxu0 0.0
        %1213 = vmatpush1.msra.mxu0 0.0
        %1214 = vmatprep.subr.mxu0 0.0
        %1215 = vmatpush1.msra.mxu0 0.0
        %1216 = vmatprep.subr.mxu0 0.0
        %1217 = vmatpush1.msra.mxu0 0.0
        %1218 = vmatprep.subr.mxu0 0.0
        %1219 = vmatpush1.msra.mxu0 0.0
        %1220 = vmatprep.subr.mxu0 0.0
        %1221 = vmatpush1.msra.mxu0 0.0
        %1222 = vmatprep.subr.mxu0 0.0
        %1223 = vmatpush1.msra.mxu0 0.0
        %1224 = vmatprep.subr.mxu0 0.0
        %1225 = vmatpush1.msra.mxu0 0.0
        %1226 = vmatprep.subr.mxu0 0.0
        %1227 = vmatpush1.msra.mxu0 0.0
        %1228 = vmatprep.subr.mxu0 0.0
        %1229 = vmatpush1.msra.mxu0 0.0
        %1230 = vmatprep.subr.mxu0 0.0
        %1231 = vmatpush1.msra.mxu0 0.0
        %1232 = vmatprep.subr.mxu0 0.0
        %1233 = vmatpush1.msra.mxu0 0.0
        %1234 = vmatprep.subr.mxu0 0.0
        %1235 = vmatpush1.msra.mxu0 0.0
        %1236 = vmatprep.subr.mxu0 0.0
        %1237 = vmatpush1.msra.mxu0 0.0
        %1238 = vmatprep.subr.mxu0 0.0
        %1239 = vmatpush1.msra.mxu0 0.0
        %1240 = vmatprep.subr.mxu0 0.0
        %1241 = vmatpush1.msra.mxu0 0.0
        %1242 = vmatprep.subr.mxu0 0.0
        %1243 = vmatpush1.msra.mxu0 0.0
        %1244 = vmatprep.subr.mxu0 0.0
        %1245 = vmatpush1.msra.mxu0 0.0
        %1246 = vmatprep.subr.mxu0 0.0
        %1247 = vmatpush1.msra.mxu0 0.0
        %1248 = vmatprep.subr.mxu0 0.0
        %1249 = vmatpush1.msra.mxu0 0.0
        %1250 = vmatprep.subr.mxu0 0.0
        %1251 = vmatpush1.msra.mxu0 0.0
        %1252 = vmatprep.subr.mxu0 0.0
        %1253 = vmatpush1.msra.mxu0 0.0
        %1254 = vmatprep.subr.mxu0 0.0
        %1255 = vmatpush1.msra.mxu0 0.0
        %1256 = vmatprep.subr.mxu0 0.0
        %1257 = vmatpush1.msra.mxu0 0.0
        %1258 = vmatprep.subr.mxu0 0.0
        %1259 = vmatpush1.msra.mxu0 0.0
        %1260 = vmatprep.subr.mxu0 0.0
        %1261 = vmatpush1.msra.mxu0 0.0
        %1262 = vmatprep.subr.mxu0 0.0
        %1263 = vmatpush1.msra.mxu0 0.0
        %1264 = vmatprep.subr.mxu0 0.0
        %1265 = vmatpush1.msra.mxu0 0.0
        %1266 = vmatprep.subr.mxu0 0.0
        %1267 = vmatpush1.msra.mxu0 0.0
        %1268 = vmatprep.subr.mxu0 0.0
        %1269 = vmatpush1.msra.mxu0 0.0
        %1270 = vmatprep.subr.mxu0 0.0
        %1271 = vmatpush1.msra.mxu0 0.0
        %1272 = vmatprep.mubr.f32.mxu0 0.0
        %v1273 = vand.u32 %v818, 4294901760
        %1274 = vmatmul.mubr.f32.gmra.mrb[0].mxu0 %v1273
        %v1275 = vpop.f32.mrb[0].mxu0
        %v1276 = vadd.f32 %v1203, %v1275
        %v1277 = vpop.f32.mrb[0].mxu0
        %1278 = vdwg.mxu0
        %v1279 = vld [vmem:[#allocation7] sm:$0xff]
        %v1280 = vld [vmem:[#allocation7 + $0x8] sm:$0xff]
        %v1281 = vld [vmem:[#allocation7 + $0x10] sm:$0xff]
        %v1282 = vld [vmem:[#allocation7 + $0x18] sm:$0xff]
        %v1283 = vld [vmem:[#allocation7 + $0x20] sm:$0xff]
        %v1284 = vld [vmem:[#allocation7 + $0x28] sm:$0xff]
        %v1285 = vld [vmem:[#allocation7 + $0x30] sm:$0xff]
        %v1286 = vld [vmem:[#allocation7 + $0x38] sm:$0xff]
        %v1287 = vld [vmem:[#allocation7 + $0x40] sm:$0xff]
        %v1288 = vld [vmem:[#allocation7 + $0x48] sm:$0xff]
        %v1289 = vld [vmem:[#allocation7 + $0x50] sm:$0xff]
        %v1290 = vld [vmem:[#allocation7 + $0x58] sm:$0xff]
        %v1291 = vld [vmem:[#allocation7 + $0x60] sm:$0xff]
        %v1292 = vld [vmem:[#allocation7 + $0x68] sm:$0xff]
        %v1293 = vld [vmem:[#allocation7 + $0x70] sm:$0xff]
        %v1294 = vld [vmem:[#allocation7 + $0x78] sm:$0xff]
        %1295 = vmatprep.subr.mxu0 0.0
        %v1296 = vand.u32 %v1279, 4294901760
        %1297 = vmatpush1.msra.mxu0 %v1296
        %1298 = vmatprep.subr.mxu0 0.0
        %v1299 = vand.u32 %v1280, 4294901760
        %1300 = vmatpush1.msra.mxu0 %v1299
        %1301 = vmatprep.subr.mxu0 0.0
        %v1302 = vand.u32 %v1281, 4294901760
        %1303 = vmatpush1.msra.mxu0 %v1302
        %1304 = vmatprep.subr.mxu0 0.0
        %v1305 = vand.u32 %v1282, 4294901760
        %1306 = vmatpush1.msra.mxu0 %v1305
        %1307 = vmatprep.subr.mxu0 0.0
        %v1308 = vand.u32 %v1283, 4294901760
        %1309 = vmatpush1.msra.mxu0 %v1308
        %1310 = vmatprep.subr.mxu0 0.0
        %v1311 = vand.u32 %v1284, 4294901760
        %1312 = vmatpush1.msra.mxu0 %v1311
        %1313 = vmatprep.subr.mxu0 0.0
        %v1314 = vand.u32 %v1285, 4294901760
        %1315 = vmatpush1.msra.mxu0 %v1314
        %1316 = vmatprep.subr.mxu0 0.0
        %v1317 = vand.u32 %v1286, 4294901760
        %1318 = vmatpush1.msra.mxu0 %v1317
        %1319 = vmatprep.subr.mxu0 0.0
        %v1320 = vand.u32 %v1287, 4294901760
        %1321 = vmatpush1.msra.mxu0 %v1320
        %1322 = vmatprep.subr.mxu0 0.0
        %v1323 = vand.u32 %v1288, 4294901760
        %1324 = vmatpush1.msra.mxu0 %v1323
        %1325 = vmatprep.subr.mxu0 0.0
        %v1326 = vand.u32 %v1289, 4294901760
        %1327 = vmatpush1.msra.mxu0 %v1326
        %1328 = vmatprep.subr.mxu0 0.0
        %v1329 = vand.u32 %v1290, 4294901760
        %1330 = vmatpush1.msra.mxu0 %v1329
        %1331 = vmatprep.subr.mxu0 0.0
        %v1332 = vand.u32 %v1291, 4294901760
        %1333 = vmatpush1.msra.mxu0 %v1332
        %1334 = vmatprep.subr.mxu0 0.0
        %v1335 = vand.u32 %v1292, 4294901760
        %1336 = vmatpush1.msra.mxu0 %v1335
        %1337 = vmatprep.subr.mxu0 0.0
        %v1338 = vand.u32 %v1293, 4294901760
        %1339 = vmatpush1.msra.mxu0 %v1338
        %1340 = vmatprep.subr.mxu0 0.0
        %v1341 = vand.u32 %v1294, 4294901760
        %1342 = vmatpush1.msra.mxu0 %v1341
        %1343 = vmatprep.subr.mxu0 0.0
        %1344 = vmatpush1.msra.mxu0 0.0
        %1345 = vmatprep.subr.mxu0 0.0
        %1346 = vmatpush1.msra.mxu0 0.0
        %1347 = vmatprep.subr.mxu0 0.0
        %1348 = vmatpush1.msra.mxu0 0.0
        %1349 = vmatprep.subr.mxu0 0.0
        %1350 = vmatpush1.msra.mxu0 0.0
        %1351 = vmatprep.subr.mxu0 0.0
        %1352 = vmatpush1.msra.mxu0 0.0
        %1353 = vmatprep.subr.mxu0 0.0
        %1354 = vmatpush1.msra.mxu0 0.0
        %1355 = vmatprep.subr.mxu0 0.0
        %1356 = vmatpush1.msra.mxu0 0.0
        %1357 = vmatprep.subr.mxu0 0.0
        %1358 = vmatpush1.msra.mxu0 0.0
        %1359 = vmatprep.subr.mxu0 0.0
        %1360 = vmatpush1.msra.mxu0 0.0
        %1361 = vmatprep.subr.mxu0 0.0
        %1362 = vmatpush1.msra.mxu0 0.0
        %1363 = vmatprep.subr.mxu0 0.0
        %1364 = vmatpush1.msra.mxu0 0.0
        %1365 = vmatprep.subr.mxu0 0.0
        %1366 = vmatpush1.msra.mxu0 0.0
        %1367 = vmatprep.subr.mxu0 0.0
        %1368 = vmatpush1.msra.mxu0 0.0
        %1369 = vmatprep.subr.mxu0 0.0
        %1370 = vmatpush1.msra.mxu0 0.0
        %1371 = vmatprep.subr.mxu0 0.0
        %1372 = vmatpush1.msra.mxu0 0.0
        %1373 = vmatprep.subr.mxu0 0.0
        %1374 = vmatpush1.msra.mxu0 0.0
        %1375 = vmatprep.mubr.f32.mxu0 0.0
        %v1376 = vand.u32 %v1276, 4294901760
        %v1377 = vsub.f32 %v1276, %v1376
        %v1378 = vand.u32 %v1377, 4294901760
        %v1379 = vsub.f32 %v1377, %v1378
        %v1380 = vand.u32 %v1379, 4294901760
        %1381 = vmatmul.mubr.f32.gmra.mrb[0].mxu0 %v1380
        %v1382 = vpop.f32.mrb[0].mxu0
        %v1383 = vadd.f32 0.0, %v1382
        %v1384 = vpop.f32.mrb[0].mxu0
        %1385 = vdwg.mxu0
        %1386 = vmatprep.subr.mxu0 0.0
        %v1387 = vand.u32 %v1279, 4294901760
        %v1388 = vsub.f32 %v1279, %v1387
        %v1389 = vand.u32 %v1388, 4294901760
        %v1390 = vsub.f32 %v1388, %v1389
        %v1391 = vand.u32 %v1390, 4294901760
        %1392 = vmatpush1.msra.mxu0 %v1391
        %1393 = vmatprep.subr.mxu0 0.0
        %v1394 = vand.u32 %v1280, 4294901760
        %v1395 = vsub.f32 %v1280, %v1394
        %v1396 = vand.u32 %v1395, 4294901760
        %v1397 = vsub.f32 %v1395, %v1396
        %v1398 = vand.u32 %v1397, 4294901760
        %1399 = vmatpush1.msra.mxu0 %v1398
        %1400 = vmatprep.subr.mxu0 0.0
        %v1401 = vand.u32 %v1281, 4294901760
        %v1402 = vsub.f32 %v1281, %v1401
        %v1403 = vand.u32 %v1402, 4294901760
        %v1404 = vsub.f32 %v1402, %v1403
        %v1405 = vand.u32 %v1404, 4294901760
        %1406 = vmatpush1.msra.mxu0 %v1405
        %1407 = vmatprep.subr.mxu0 0.0
        %v1408 = vand.u32 %v1282, 4294901760
        %v1409 = vsub.f32 %v1282, %v1408
        %v1410 = vand.u32 %v1409, 4294901760
        %v1411 = vsub.f32 %v1409, %v1410
        %v1412 = vand.u32 %v1411, 4294901760
        %1413 = vmatpush1.msra.mxu0 %v1412
        %1414 = vmatprep.subr.mxu0 0.0
        %v1415 = vand.u32 %v1283, 4294901760
        %v1416 = vsub.f32 %v1283, %v1415
        %v1417 = vand.u32 %v1416, 4294901760
        %v1418 = vsub.f32 %v1416, %v1417
        %v1419 = vand.u32 %v1418, 4294901760
        %1420 = vmatpush1.msra.mxu0 %v1419
        %1421 = vmatprep.subr.mxu0 0.0
        %v1422 = vand.u32 %v1284, 4294901760
        %v1423 = vsub.f32 %v1284, %v1422
        %v1424 = vand.u32 %v1423, 4294901760
        %v1425 = vsub.f32 %v1423, %v1424
        %v1426 = vand.u32 %v1425, 4294901760
        %1427 = vmatpush1.msra.mxu0 %v1426
        %1428 = vmatprep.subr.mxu0 0.0
        %v1429 = vand.u32 %v1285, 4294901760
        %v1430 = vsub.f32 %v1285, %v1429
        %v1431 = vand.u32 %v1430, 4294901760
        %v1432 = vsub.f32 %v1430, %v1431
        %v1433 = vand.u32 %v1432, 4294901760
        %1434 = vmatpush1.msra.mxu0 %v1433
        %1435 = vmatprep.subr.mxu0 0.0
        %v1436 = vand.u32 %v1286, 4294901760
        %v1437 = vsub.f32 %v1286, %v1436
        %v1438 = vand.u32 %v1437, 4294901760
        %v1439 = vsub.f32 %v1437, %v1438
        %v1440 = vand.u32 %v1439, 4294901760
        %1441 = vmatpush1.msra.mxu0 %v1440
        %1442 = vmatprep.subr.mxu0 0.0
        %v1443 = vand.u32 %v1287, 4294901760
        %v1444 = vsub.f32 %v1287, %v1443
        %v1445 = vand.u32 %v1444, 4294901760
        %v1446 = vsub.f32 %v1444, %v1445
        %v1447 = vand.u32 %v1446, 4294901760
        %1448 = vmatpush1.msra.mxu0 %v1447
        %1449 = vmatprep.subr.mxu0 0.0
        %v1450 = vand.u32 %v1288, 4294901760
        %v1451 = vsub.f32 %v1288, %v1450
        %v1452 = vand.u32 %v1451, 4294901760
        %v1453 = vsub.f32 %v1451, %v1452
        %v1454 = vand.u32 %v1453, 4294901760
        %1455 = vmatpush1.msra.mxu0 %v1454
        %1456 = vmatprep.subr.mxu0 0.0
        %v1457 = vand.u32 %v1289, 4294901760
        %v1458 = vsub.f32 %v1289, %v1457
        %v1459 = vand.u32 %v1458, 4294901760
        %v1460 = vsub.f32 %v1458, %v1459
        %v1461 = vand.u32 %v1460, 4294901760
        %1462 = vmatpush1.msra.mxu0 %v1461
        %1463 = vmatprep.subr.mxu0 0.0
        %v1464 = vand.u32 %v1290, 4294901760
        %v1465 = vsub.f32 %v1290, %v1464
        %v1466 = vand.u32 %v1465, 4294901760
        %v1467 = vsub.f32 %v1465, %v1466
        %v1468 = vand.u32 %v1467, 4294901760
        %1469 = vmatpush1.msra.mxu0 %v1468
        %1470 = vmatprep.subr.mxu0 0.0
        %v1471 = vand.u32 %v1291, 4294901760
        %v1472 = vsub.f32 %v1291, %v1471
        %v1473 = vand.u32 %v1472, 4294901760
        %v1474 = vsub.f32 %v1472, %v1473
        %v1475 = vand.u32 %v1474, 4294901760
        %1476 = vmatpush1.msra.mxu0 %v1475
        %1477 = vmatprep.subr.mxu0 0.0
        %v1478 = vand.u32 %v1292, 4294901760
        %v1479 = vsub.f32 %v1292, %v1478
        %v1480 = vand.u32 %v1479, 4294901760
        %v1481 = vsub.f32 %v1479, %v1480
        %v1482 = vand.u32 %v1481, 4294901760
        %1483 = vmatpush1.msra.mxu0 %v1482
        %1484 = vmatprep.subr.mxu0 0.0
        %v1485 = vand.u32 %v1293, 4294901760
        %v1486 = vsub.f32 %v1293, %v1485
        %v1487 = vand.u32 %v1486, 4294901760
        %v1488 = vsub.f32 %v1486, %v1487
        %v1489 = vand.u32 %v1488, 4294901760
        %1490 = vmatpush1.msra.mxu0 %v1489
        %1491 = vmatprep.subr.mxu0 0.0
        %v1492 = vand.u32 %v1294, 4294901760
        %v1493 = vsub.f32 %v1294, %v1492
        %v1494 = vand.u32 %v1493, 4294901760
        %v1495 = vsub.f32 %v1493, %v1494
        %v1496 = vand.u32 %v1495, 4294901760
        %1497 = vmatpush1.msra.mxu0 %v1496
        %1498 = vmatprep.subr.mxu0 0.0
        %1499 = vmatpush1.msra.mxu0 0.0
        %1500 = vmatprep.subr.mxu0 0.0
        %1501 = vmatpush1.msra.mxu0 0.0
        %1502 = vmatprep.subr.mxu0 0.0
        %1503 = vmatpush1.msra.mxu0 0.0
        %1504 = vmatprep.subr.mxu0 0.0
        %1505 = vmatpush1.msra.mxu0 0.0
        %1506 = vmatprep.subr.mxu0 0.0
        %1507 = vmatpush1.msra.mxu0 0.0
        %1508 = vmatprep.subr.mxu0 0.0
        %1509 = vmatpush1.msra.mxu0 0.0
        %1510 = vmatprep.subr.mxu0 0.0
        %1511 = vmatpush1.msra.mxu0 0.0
        %1512 = vmatprep.subr.mxu0 0.0
        %1513 = vmatpush1.msra.mxu0 0.0
        %1514 = vmatprep.subr.mxu0 0.0
        %1515 = vmatpush1.msra.mxu0 0.0
        %1516 = vmatprep.subr.mxu0 0.0
        %1517 = vmatpush1.msra.mxu0 0.0
        %1518 = vmatprep.subr.mxu0 0.0
        %1519 = vmatpush1.msra.mxu0 0.0
        %1520 = vmatprep.subr.mxu0 0.0
        %1521 = vmatpush1.msra.mxu0 0.0
        %1522 = vmatprep.subr.mxu0 0.0
        %1523 = vmatpush1.msra.mxu0 0.0
        %1524 = vmatprep.subr.mxu0 0.0
        %1525 = vmatpush1.msra.mxu0 0.0
        %1526 = vmatprep.subr.mxu0 0.0
        %1527 = vmatpush1.msra.mxu0 0.0
        %1528 = vmatprep.subr.mxu0 0.0
        %1529 = vmatpush1.msra.mxu0 0.0
        %1530 = vmatprep.mubr.f32.mxu0 0.0
        %v1531 = vand.u32 %v1276, 4294901760
        %1532 = vmatmul.mubr.f32.gmra.mrb[0].mxu0 %v1531
        %v1533 = vpop.f32.mrb[0].mxu0
        %v1534 = vadd.f32 %v1383, %v1533
        %v1535 = vpop.f32.mrb[0].mxu0
        %1536 = vdwg.mxu0
        %1537 = vmatprep.subr.mxu0 0.0
        %v1538 = vand.u32 %v1279, 4294901760
        %v1539 = vsub.f32 %v1279, %v1538
        %1540 = vmatpush1.msra.mxu0 %v1539
        %1541 = vmatprep.subr.mxu0 0.0
        %v1542 = vand.u32 %v1280, 4294901760
        %v1543 = vsub.f32 %v1280, %v1542
        %1544 = vmatpush1.msra.mxu0 %v1543
        %1545 = vmatprep.subr.mxu0 0.0
        %v1546 = vand.u32 %v1281, 4294901760
        %v1547 = vsub.f32 %v1281, %v1546
        %1548 = vmatpush1.msra.mxu0 %v1547
        %1549 = vmatprep.subr.mxu0 0.0
        %v1550 = vand.u32 %v1282, 4294901760
        %v1551 = vsub.f32 %v1282, %v1550
        %1552 = vmatpush1.msra.mxu0 %v1551
        %1553 = vmatprep.subr.mxu0 0.0
        %v1554 = vand.u32 %v1283, 4294901760
        %v1555 = vsub.f32 %v1283, %v1554
        %1556 = vmatpush1.msra.mxu0 %v1555
        %1557 = vmatprep.subr.mxu0 0.0
        %v1558 = vand.u32 %v1284, 4294901760
        %v1559 = vsub.f32 %v1284, %v1558
        %1560 = vmatpush1.msra.mxu0 %v1559
        %1561 = vmatprep.subr.mxu0 0.0
        %v1562 = vand.u32 %v1285, 4294901760
        %v1563 = vsub.f32 %v1285, %v1562
        %1564 = vmatpush1.msra.mxu0 %v1563
        %1565 = vmatprep.subr.mxu0 0.0
        %v1566 = vand.u32 %v1286, 4294901760
        %v1567 = vsub.f32 %v1286, %v1566
        %1568 = vmatpush1.msra.mxu0 %v1567
        %1569 = vmatprep.subr.mxu0 0.0
        %v1570 = vand.u32 %v1287, 4294901760
        %v1571 = vsub.f32 %v1287, %v1570
        %1572 = vmatpush1.msra.mxu0 %v1571
        %1573 = vmatprep.subr.mxu0 0.0
        %v1574 = vand.u32 %v1288, 4294901760
        %v1575 = vsub.f32 %v1288, %v1574
        %1576 = vmatpush1.msra.mxu0 %v1575
        %1577 = vmatprep.subr.mxu0 0.0
        %v1578 = vand.u32 %v1289, 4294901760
        %v1579 = vsub.f32 %v1289, %v1578
        %1580 = vmatpush1.msra.mxu0 %v1579
        %1581 = vmatprep.subr.mxu0 0.0
        %v1582 = vand.u32 %v1290, 4294901760
        %v1583 = vsub.f32 %v1290, %v1582
        %1584 = vmatpush1.msra.mxu0 %v1583
        %1585 = vmatprep.subr.mxu0 0.0
        %v1586 = vand.u32 %v1291, 4294901760
        %v1587 = vsub.f32 %v1291, %v1586
        %1588 = vmatpush1.msra.mxu0 %v1587
        %1589 = vmatprep.subr.mxu0 0.0
        %v1590 = vand.u32 %v1292, 4294901760
        %v1591 = vsub.f32 %v1292, %v1590
        %1592 = vmatpush1.msra.mxu0 %v1591
        %1593 = vmatprep.subr.mxu0 0.0
        %v1594 = vand.u32 %v1293, 4294901760
        %v1595 = vsub.f32 %v1293, %v1594
        %1596 = vmatpush1.msra.mxu0 %v1595
        %1597 = vmatprep.subr.mxu0 0.0
        %v1598 = vand.u32 %v1294, 4294901760
        %v1599 = vsub.f32 %v1294, %v1598
        %1600 = vmatpush1.msra.mxu0 %v1599
        %1601 = vmatprep.subr.mxu0 0.0
        %1602 = vmatpush1.msra.mxu0 0.0
        %1603 = vmatprep.subr.mxu0 0.0
        %1604 = vmatpush1.msra.mxu0 0.0
        %1605 = vmatprep.subr.mxu0 0.0
        %1606 = vmatpush1.msra.mxu0 0.0
        %1607 = vmatprep.subr.mxu0 0.0
        %1608 = vmatpush1.msra.mxu0 0.0
        %1609 = vmatprep.subr.mxu0 0.0
        %1610 = vmatpush1.msra.mxu0 0.0
        %1611 = vmatprep.subr.mxu0 0.0
        %1612 = vmatpush1.msra.mxu0 0.0
        %1613 = vmatprep.subr.mxu0 0.0
        %1614 = vmatpush1.msra.mxu0 0.0
        %1615 = vmatprep.subr.mxu0 0.0
        %1616 = vmatpush1.msra.mxu0 0.0
        %1617 = vmatprep.subr.mxu0 0.0
        %1618 = vmatpush1.msra.mxu0 0.0
        %1619 = vmatprep.subr.mxu0 0.0
        %1620 = vmatpush1.msra.mxu0 0.0
        %1621 = vmatprep.subr.mxu0 0.0
        %1622 = vmatpush1.msra.mxu0 0.0
        %1623 = vmatprep.subr.mxu0 0.0
        %1624 = vmatpush1.msra.mxu0 0.0
        %1625 = vmatprep.subr.mxu0 0.0
        %1626 = vmatpush1.msra.mxu0 0.0
        %1627 = vmatprep.subr.mxu0 0.0
        %1628 = vmatpush1.msra.mxu0 0.0
        %1629 = vmatprep.subr.mxu0 0.0
        %1630 = vmatpush1.msra.mxu0 0.0
        %1631 = vmatprep.subr.mxu0 0.0
        %1632 = vmatpush1.msra.mxu0 0.0
        %1633 = vmatprep.mubr.f32.mxu0 0.0
        %v1634 = vand.u32 %v1276, 4294901760
        %v1635 = vsub.f32 %v1276, %v1634
        %1636 = vmatmul.mubr.f32.gmra.mrb[0].mxu0 %v1635
        %v1637 = vpop.f32.mrb[0].mxu0
        %v1638 = vadd.f32 %v1534, %v1637
        %v1639 = vpop.f32.mrb[0].mxu0
        %1640 = vdwg.mxu0
        %1641 = vmatprep.subr.mxu0 0.0
        %v1642 = vand.u32 %v1279, 4294901760
        %1643 = vmatpush1.msra.mxu0 %v1642
        %1644 = vmatprep.subr.mxu0 0.0
        %v1645 = vand.u32 %v1280, 4294901760
        %1646 = vmatpush1.msra.mxu0 %v1645
        %1647 = vmatprep.subr.mxu0 0.0
        %v1648 = vand.u32 %v1281, 4294901760
        %1649 = vmatpush1.msra.mxu0 %v1648
        %1650 = vmatprep.subr.mxu0 0.0
        %v1651 = vand.u32 %v1282, 4294901760
        %1652 = vmatpush1.msra.mxu0 %v1651
        %1653 = vmatprep.subr.mxu0 0.0
        %v1654 = vand.u32 %v1283, 4294901760
        %1655 = vmatpush1.msra.mxu0 %v1654
        %1656 = vmatprep.subr.mxu0 0.0
        %v1657 = vand.u32 %v1284, 4294901760
        %1658 = vmatpush1.msra.mxu0 %v1657
        %1659 = vmatprep.subr.mxu0 0.0
        %v1660 = vand.u32 %v1285, 4294901760
        %1661 = vmatpush1.msra.mxu0 %v1660
        %1662 = vmatprep.subr.mxu0 0.0
        %v1663 = vand.u32 %v1286, 4294901760
        %1664 = vmatpush1.msra.mxu0 %v1663
        %1665 = vmatprep.subr.mxu0 0.0
        %v1666 = vand.u32 %v1287, 4294901760
        %1667 = vmatpush1.msra.mxu0 %v1666
        %1668 = vmatprep.subr.mxu0 0.0
        %v1669 = vand.u32 %v1288, 4294901760
        %1670 = vmatpush1.msra.mxu0 %v1669
        %1671 = vmatprep.subr.mxu0 0.0
        %v1672 = vand.u32 %v1289, 4294901760
        %1673 = vmatpush1.msra.mxu0 %v1672
        %1674 = vmatprep.subr.mxu0 0.0
        %v1675 = vand.u32 %v1290, 4294901760
        %1676 = vmatpush1.msra.mxu0 %v1675
        %1677 = vmatprep.subr.mxu0 0.0
        %v1678 = vand.u32 %v1291, 4294901760
        %1679 = vmatpush1.msra.mxu0 %v1678
        %1680 = vmatprep.subr.mxu0 0.0
        %v1681 = vand.u32 %v1292, 4294901760
        %1682 = vmatpush1.msra.mxu0 %v1681
        %1683 = vmatprep.subr.mxu0 0.0
        %v1684 = vand.u32 %v1293, 4294901760
        %1685 = vmatpush1.msra.mxu0 %v1684
        %1686 = vmatprep.subr.mxu0 0.0
        %v1687 = vand.u32 %v1294, 4294901760
        %1688 = vmatpush1.msra.mxu0 %v1687
        %1689 = vmatprep.subr.mxu0 0.0
        %1690 = vmatpush1.msra.mxu0 0.0
        %1691 = vmatprep.subr.mxu0 0.0
        %1692 = vmatpush1.msra.mxu0 0.0
        %1693 = vmatprep.subr.mxu0 0.0
        %1694 = vmatpush1.msra.mxu0 0.0
        %1695 = vmatprep.subr.mxu0 0.0
        %1696 = vmatpush1.msra.mxu0 0.0
        %1697 = vmatprep.subr.mxu0 0.0
        %1698 = vmatpush1.msra.mxu0 0.0
        %1699 = vmatprep.subr.mxu0 0.0
        %1700 = vmatpush1.msra.mxu0 0.0
        %1701 = vmatprep.subr.mxu0 0.0
        %1702 = vmatpush1.msra.mxu0 0.0
        %1703 = vmatprep.subr.mxu0 0.0
        %1704 = vmatpush1.msra.mxu0 0.0
        %1705 = vmatprep.subr.mxu0 0.0
        %1706 = vmatpush1.msra.mxu0 0.0
        %1707 = vmatprep.subr.mxu0 0.0
        %1708 = vmatpush1.msra.mxu0 0.0
        %1709 = vmatprep.subr.mxu0 0.0
        %1710 = vmatpush1.msra.mxu0 0.0
        %1711 = vmatprep.subr.mxu0 0.0
        %1712 = vmatpush1.msra.mxu0 0.0
        %1713 = vmatprep.subr.mxu0 0.0
        %1714 = vmatpush1.msra.mxu0 0.0
        %1715 = vmatprep.subr.mxu0 0.0
        %1716 = vmatpush1.msra.mxu0 0.0
        %1717 = vmatprep.subr.mxu0 0.0
        %1718 = vmatpush1.msra.mxu0 0.0
        %1719 = vmatprep.subr.mxu0 0.0
        %1720 = vmatpush1.msra.mxu0 0.0
        %1721 = vmatprep.mubr.f32.mxu0 0.0
        %v1722 = vand.u32 %v1276, 4294901760
        %v1723 = vsub.f32 %v1276, %v1722
        %v1724 = vand.u32 %v1723, 4294901760
        %1725 = vmatmul.mubr.f32.gmra.mrb[0].mxu0 %v1724
        %v1726 = vpop.f32.mrb[0].mxu0
        %v1727 = vadd.f32 %v1638, %v1726
        %v1728 = vpop.f32.mrb[0].mxu0
        %1729 = vdwg.mxu0
        %1730 = vmatprep.subr.mxu0 0.0
        %v1731 = vand.u32 %v1279, 4294901760
        %v1732 = vsub.f32 %v1279, %v1731
        %v1733 = vand.u32 %v1732, 4294901760
        %1734 = vmatpush1.msra.mxu0 %v1733
        %1735 = vmatprep.subr.mxu0 0.0
        %v1736 = vand.u32 %v1280, 4294901760
        %v1737 = vsub.f32 %v1280, %v1736
        %v1738 = vand.u32 %v1737, 4294901760
        %1739 = vmatpush1.msra.mxu0 %v1738
        %1740 = vmatprep.subr.mxu0 0.0
        %v1741 = vand.u32 %v1281, 4294901760
        %v1742 = vsub.f32 %v1281, %v1741
        %v1743 = vand.u32 %v1742, 4294901760
        %1744 = vmatpush1.msra.mxu0 %v1743
        %1745 = vmatprep.subr.mxu0 0.0
        %v1746 = vand.u32 %v1282, 4294901760
        %v1747 = vsub.f32 %v1282, %v1746
        %v1748 = vand.u32 %v1747, 4294901760
        %1749 = vmatpush1.msra.mxu0 %v1748
        %1750 = vmatprep.subr.mxu0 0.0
        %v1751 = vand.u32 %v1283, 4294901760
        %v1752 = vsub.f32 %v1283, %v1751
        %v1753 = vand.u32 %v1752, 4294901760
        %1754 = vmatpush1.msra.mxu0 %v1753
        %1755 = vmatprep.subr.mxu0 0.0
        %v1756 = vand.u32 %v1284, 4294901760
        %v1757 = vsub.f32 %v1284, %v1756
        %v1758 = vand.u32 %v1757, 4294901760
        %1759 = vmatpush1.msra.mxu0 %v1758
        %1760 = vmatprep.subr.mxu0 0.0
        %v1761 = vand.u32 %v1285, 4294901760
        %v1762 = vsub.f32 %v1285, %v1761
        %v1763 = vand.u32 %v1762, 4294901760
        %1764 = vmatpush1.msra.mxu0 %v1763
        %1765 = vmatprep.subr.mxu0 0.0
        %v1766 = vand.u32 %v1286, 4294901760
        %v1767 = vsub.f32 %v1286, %v1766
        %v1768 = vand.u32 %v1767, 4294901760
        %1769 = vmatpush1.msra.mxu0 %v1768
        %1770 = vmatprep.subr.mxu0 0.0
        %v1771 = vand.u32 %v1287, 4294901760
        %v1772 = vsub.f32 %v1287, %v1771
        %v1773 = vand.u32 %v1772, 4294901760
        %1774 = vmatpush1.msra.mxu0 %v1773
        %1775 = vmatprep.subr.mxu0 0.0
        %v1776 = vand.u32 %v1288, 4294901760
        %v1777 = vsub.f32 %v1288, %v1776
        %v1778 = vand.u32 %v1777, 4294901760
        %1779 = vmatpush1.msra.mxu0 %v1778
        %1780 = vmatprep.subr.mxu0 0.0
        %v1781 = vand.u32 %v1289, 4294901760
        %v1782 = vsub.f32 %v1289, %v1781
        %v1783 = vand.u32 %v1782, 4294901760
        %1784 = vmatpush1.msra.mxu0 %v1783
        %1785 = vmatprep.subr.mxu0 0.0
        %v1786 = vand.u32 %v1290, 4294901760
        %v1787 = vsub.f32 %v1290, %v1786
        %v1788 = vand.u32 %v1787, 4294901760
        %1789 = vmatpush1.msra.mxu0 %v1788
        %1790 = vmatprep.subr.mxu0 0.0
        %v1791 = vand.u32 %v1291, 4294901760
        %v1792 = vsub.f32 %v1291, %v1791
        %v1793 = vand.u32 %v1792, 4294901760
        %1794 = vmatpush1.msra.mxu0 %v1793
        %1795 = vmatprep.subr.mxu0 0.0
        %v1796 = vand.u32 %v1292, 4294901760
        %v1797 = vsub.f32 %v1292, %v1796
        %v1798 = vand.u32 %v1797, 4294901760
        %1799 = vmatpush1.msra.mxu0 %v1798
        %1800 = vmatprep.subr.mxu0 0.0
        %v1801 = vand.u32 %v1293, 4294901760
        %v1802 = vsub.f32 %v1293, %v1801
        %v1803 = vand.u32 %v1802, 4294901760
        %1804 = vmatpush1.msra.mxu0 %v1803
        %1805 = vmatprep.subr.mxu0 0.0
        %v1806 = vand.u32 %v1294, 4294901760
        %v1807 = vsub.f32 %v1294, %v1806
        %v1808 = vand.u32 %v1807, 4294901760
        %1809 = vmatpush1.msra.mxu0 %v1808
        %1810 = vmatprep.subr.mxu0 0.0
        %1811 = vmatpush1.msra.mxu0 0.0
        %1812 = vmatprep.subr.mxu0 0.0
        %1813 = vmatpush1.msra.mxu0 0.0
        %1814 = vmatprep.subr.mxu0 0.0
        %1815 = vmatpush1.msra.mxu0 0.0
        %1816 = vmatprep.subr.mxu0 0.0
        %1817 = vmatpush1.msra.mxu0 0.0
        %1818 = vmatprep.subr.mxu0 0.0
        %1819 = vmatpush1.msra.mxu0 0.0
        %1820 = vmatprep.subr.mxu0 0.0
        %1821 = vmatpush1.msra.mxu0 0.0
        %1822 = vmatprep.subr.mxu0 0.0
        %1823 = vmatpush1.msra.mxu0 0.0
        %1824 = vmatprep.subr.mxu0 0.0
        %1825 = vmatpush1.msra.mxu0 0.0
        %1826 = vmatprep.subr.mxu0 0.0
        %1827 = vmatpush1.msra.mxu0 0.0
        %1828 = vmatprep.subr.mxu0 0.0
        %1829 = vmatpush1.msra.mxu0 0.0
        %1830 = vmatprep.subr.mxu0 0.0
        %1831 = vmatpush1.msra.mxu0 0.0
        %1832 = vmatprep.subr.mxu0 0.0
        %1833 = vmatpush1.msra.mxu0 0.0
        %1834 = vmatprep.subr.mxu0 0.0
        %1835 = vmatpush1.msra.mxu0 0.0
        %1836 = vmatprep.subr.mxu0 0.0
        %1837 = vmatpush1.msra.mxu0 0.0
        %1838 = vmatprep.subr.mxu0 0.0
        %1839 = vmatpush1.msra.mxu0 0.0
        %1840 = vmatprep.subr.mxu0 0.0
        %1841 = vmatpush1.msra.mxu0 0.0
        %1842 = vmatprep.mubr.f32.mxu0 0.0
        %v1843 = vand.u32 %v1276, 4294901760
        %1844 = vmatmul.mubr.f32.gmra.mrb[0].mxu0 %v1843
        %v1845 = vpop.f32.mrb[0].mxu0
        %v1846 = vadd.f32 %v1727, %v1845
        %v1847 = vpop.f32.mrb[0].mxu0
        %1848 = vdwg.mxu0
        %1849 = vmatprep.subr.mxu0 0.0
        %v1850 = vand.u32 %v1279, 4294901760
        %1851 = vmatpush1.msra.mxu0 %v1850
        %1852 = vmatprep.subr.mxu0 0.0
        %v1853 = vand.u32 %v1280, 4294901760
        %1854 = vmatpush1.msra.mxu0 %v1853
        %1855 = vmatprep.subr.mxu0 0.0
        %v1856 = vand.u32 %v1281, 4294901760
        %1857 = vmatpush1.msra.mxu0 %v1856
        %1858 = vmatprep.subr.mxu0 0.0
        %v1859 = vand.u32 %v1282, 4294901760
        %1860 = vmatpush1.msra.mxu0 %v1859
        %1861 = vmatprep.subr.mxu0 0.0
        %v1862 = vand.u32 %v1283, 4294901760
        %1863 = vmatpush1.msra.mxu0 %v1862
        %1864 = vmatprep.subr.mxu0 0.0
        %v1865 = vand.u32 %v1284, 4294901760
        %1866 = vmatpush1.msra.mxu0 %v1865
        %1867 = vmatprep.subr.mxu0 0.0
        %v1868 = vand.u32 %v1285, 4294901760
        %1869 = vmatpush1.msra.mxu0 %v1868
        %1870 = vmatprep.subr.mxu0 0.0
        %v1871 = vand.u32 %v1286, 4294901760
        %1872 = vmatpush1.msra.mxu0 %v1871
        %1873 = vmatprep.subr.mxu0 0.0
        %v1874 = vand.u32 %v1287, 4294901760
        %1875 = vmatpush1.msra.mxu0 %v1874
        %1876 = vmatprep.subr.mxu0 0.0
        %v1877 = vand.u32 %v1288, 4294901760
        %1878 = vmatpush1.msra.mxu0 %v1877
        %1879 = vmatprep.subr.mxu0 0.0
        %v1880 = vand.u32 %v1289, 4294901760
        %1881 = vmatpush1.msra.mxu0 %v1880
        %1882 = vmatprep.subr.mxu0 0.0
        %v1883 = vand.u32 %v1290, 4294901760
        %1884 = vmatpush1.msra.mxu0 %v1883
        %1885 = vmatprep.subr.mxu0 0.0
        %v1886 = vand.u32 %v1291, 4294901760
        %1887 = vmatpush1.msra.mxu0 %v1886
        %1888 = vmatprep.subr.mxu0 0.0
        %v1889 = vand.u32 %v1292, 4294901760
        %1890 = vmatpush1.msra.mxu0 %v1889
        %1891 = vmatprep.subr.mxu0 0.0
        %v1892 = vand.u32 %v1293, 4294901760
        %1893 = vmatpush1.msra.mxu0 %v1892
        %1894 = vmatprep.subr.mxu0 0.0
        %v1895 = vand.u32 %v1294, 4294901760
        %1896 = vmatpush1.msra.mxu0 %v1895
        %1897 = vmatprep.subr.mxu0 0.0
        %1898 = vmatpush1.msra.mxu0 0.0
        %1899 = vmatprep.subr.mxu0 0.0
        %1900 = vmatpush1.msra.mxu0 0.0
        %1901 = vmatprep.subr.mxu0 0.0
        %1902 = vmatpush1.msra.mxu0 0.0
        %1903 = vmatprep.subr.mxu0 0.0
        %1904 = vmatpush1.msra.mxu0 0.0
        %1905 = vmatprep.subr.mxu0 0.0
        %1906 = vmatpush1.msra.mxu0 0.0
        %1907 = vmatprep.subr.mxu0 0.0
        %1908 = vmatpush1.msra.mxu0 0.0
        %1909 = vmatprep.subr.mxu0 0.0
        %1910 = vmatpush1.msra.mxu0 0.0
        %1911 = vmatprep.subr.mxu0 0.0
        %1912 = vmatpush1.msra.mxu0 0.0
        %1913 = vmatprep.subr.mxu0 0.0
        %1914 = vmatpush1.msra.mxu0 0.0
        %1915 = vmatprep.subr.mxu0 0.0
        %1916 = vmatpush1.msra.mxu0 0.0
        %1917 = vmatprep.subr.mxu0 0.0
        %1918 = vmatpush1.msra.mxu0 0.0
        %1919 = vmatprep.subr.mxu0 0.0
        %1920 = vmatpush1.msra.mxu0 0.0
        %1921 = vmatprep.subr.mxu0 0.0
        %1922 = vmatpush1.msra.mxu0 0.0
        %1923 = vmatprep.subr.mxu0 0.0
        %1924 = vmatpush1.msra.mxu0 0.0
        %1925 = vmatprep.subr.mxu0 0.0
        %1926 = vmatpush1.msra.mxu0 0.0
        %1927 = vmatprep.subr.mxu0 0.0
        %1928 = vmatpush1.msra.mxu0 0.0
        %1929 = vmatprep.mubr.f32.mxu0 0.0
        %v1930 = vand.u32 %v1276, 4294901760
        %1931 = vmatmul.mubr.f32.gmra.mrb[0].mxu0 %v1930
        %v1932 = vpop.f32.mrb[0].mxu0
        %v1933 = vadd.f32 %v1846, %v1932
        %v1934 = vpop.f32.mrb[0].mxu0
        %1935 = vdwg.mxu0
        %1936 = vst [vmem:[%s344] sm:$0xff] %v1933
        %s1937 = sand.u32 %s167, 1
        %s1938 = scalar_lea.sflag [#allocation4], %s1937
        %s1939 = sand.u32 %s167, 1
        %s1940 = smul.addr %s1939, 8
        %s1941 = scalar_lea.vmem [#allocation11], %s1940
        // Predicated region
        $region61: #{tpu_custom_call.1} parent=39 // pred_check
          %p1942 = pneg %p177
        $region62: #{tpu_custom_call.1} parent=39 // pred_check_branch
          %1944 = sbr.rel (%p1942) target = $region64
        $region63: #{tpu_custom_call.1} parent=39 // pred_region
          %s1946 = ssub.s32 128, 128
          %1947 = vsyncadd %s1938, %s1946
          %s1948 = sadd.s32 %s29, %s28
          %s1949 = smul.addr %s1948, 128
          %s1950 = scalar_lea.hbm %s5, %s1949
          %s1952 = sshll.u32 %s1941, 4
          %s1953 = int_to_ptr.vmem [resolvable:$true] %s1952
          %1955 = dma.vmem_to_hbm [thread:$0]  %s1953, 128, %s1950, %s1938
        $region64: #{tpu_custom_call.1} parent=39 // pred_fallthru
          _
      $region40: #{tpu_custom_call.1} parent=5 // pred_fallthru
        _
      %p1956 = scmp.le.s32.totalorder 2, %s19
      // Predicated region
      $region65: #{tpu_custom_call.1} parent=5 // pred_check
        %p1957 = pneg %p1956
      $region66: #{tpu_custom_call.1} parent=5 // pred_check_branch
        %1959 = sbr.rel (%p1957) target = $region68
      $region67: #{tpu_custom_call.1} parent=5 // pred_region
        %s1960 = ssub.s32 %s19, 2
        // Predicated region
        $region69: #{tpu_custom_call.1} parent=67 // pred_check
          %p1961 = pneg %p183
        $region70: #{tpu_custom_call.1} parent=67 // pred_check_branch
          %1963 = sbr.rel (%p1961) target = $region72
        $region71: #{tpu_custom_call.1} parent=67 // pred_region
          %s1964 = sand.u32 %s168, 1
          %s1965 = scalar_lea.sflag [#allocation4], %s1964
          %s1966 = sand.u32 %s168, 1
          %s1967 = smul.addr %s1966, 8
          %s1968 = scalar_lea.vmem [#allocation11], %s1967
          %1969 = dma.done %s1965, 128
        $region72: #{tpu_custom_call.1} parent=67 // pred_fallthru
          _
      $region68: #{tpu_custom_call.1} parent=5 // pred_fallthru
        _
    $region6: #{tpu_custom_call.1} parent=1 // loop_footer
      %s23 = sadd.s32 1, %s19
    $region7: #{tpu_custom_call.1} parent=1 // loop_footer_branch
      %18 = sbr.rel target = $region3
    $region8: #{tpu_custom_call.1} parent=1 // loop_exit
      _
    %1970 = vsyncpa [#allocation3], 1
    %s1971 = scalar_lea.sflag [#allocation3], 1
    %1972 = vsyncpa %s1971, 1
    %1973 = vsyncpa [#allocation6], 1
    %1974 = vsyncpa [#allocation9], 1
    %s1975 = scalar_lea.sflag [#allocation9], 1
    %1976 = vsyncpa %s1975, 1
    %1977 = vsyncpa [#allocation4], 1
    %s1978 = scalar_lea.sflag [#allocation4], 1
    %1979 = vsyncpa %s1978, 1

</llo_original>
